<compile_context>
chip_gen: v7x
topology: tpu7x:2x2x1
jax: 0.10.0
libtpu: 0.0.40
codegen_flags: <defaults>
</compile_context>

<pallas_src>
import functools

import jax
import jax.numpy as jnp
from jax import lax
from jax.experimental import pallas as pl
from jax.experimental.pallas import tpu as pltpu


EPS = 1e-5


# ---------------------------------------------------------------------------
# Kernels
# ---------------------------------------------------------------------------
def _bn_add_kernel_2d(x_ref, skip_ref, params_ref, o_ref, *, c_tile, inv_count):
    # x_ref, skip_ref, o_ref: (c_tile, HW)   params_ref: (C, 2) [resident]
    x = x_ref[...].astype(jnp.float32)

    # Single-pass per-channel statistics over HW (f32 accumulation).
    s1 = jnp.sum(x, axis=1, keepdims=True)          # (c_tile, 1)
    s2 = jnp.sum(x * x, axis=1, keepdims=True)      # (c_tile, 1)
    mean = s1 * inv_count
    var = s2 * inv_count - mean * mean
    inv_std = lax.rsqrt(var + EPS)

    # Slice this tile's affine params out of the resident (C, 2) block.
    c0 = pl.multiple_of(pl.program_id(0) * c_tile, 8)
    gamma = params_ref[pl.ds(c0, c_tile), 0:1].astype(jnp.float32)   # (c_tile, 1)
    beta = params_ref[pl.ds(c0, c_tile), 1:2].astype(jnp.float32)

    scale = gamma * inv_std
    shift = beta - mean * scale

    o_ref[...] = (x * scale + shift
                  + skip_ref[...].astype(jnp.float32)).astype(o_ref.dtype)


def _bn_add_kernel_3d(x_ref, skip_ref, params_ref, o_ref, *, c_tile, inv_count):
    # x_ref, skip_ref, o_ref: (N, c_tile, HW)   params_ref: (C, 2) [resident]
    x = x_ref[...].astype(jnp.float32)

    s1 = jnp.sum(x, axis=(0, 2), keepdims=True)     # (1, c_tile, 1)
    s2 = jnp.sum(x * x, axis=(0, 2), keepdims=True)
    mean = s1 * inv_count
    var = s2 * inv_count - mean * mean
    inv_std = lax.rsqrt(var + EPS)

    c0 = pl.multiple_of(pl.program_id(0) * c_tile, 8)
    gamma = params_ref[pl.ds(c0, c_tile), 0:1].astype(jnp.float32)[None]  # (1,ct,1)
    beta = params_ref[pl.ds(c0, c_tile), 1:2].astype(jnp.float32)[None]

    scale = gamma * inv_std
    shift = beta - mean * scale

    o_ref[...] = (x * scale + shift
                  + skip_ref[...].astype(jnp.float32)).astype(o_ref.dtype)


# ---------------------------------------------------------------------------
# Tiling heuristics
# ---------------------------------------------------------------------------
def _num_tensorcores():
    """2 TensorCores per chip on v7x; 1 on v5e/v6e. Best-effort detection."""
    try:
        kind = jax.devices()[0].device_kind.lower()
    except Exception:
        return 1
    return 2 if "v7" in kind else 1


def _block_footprint_bytes(N, c_tile, HW, itemsize):
    data = N * c_tile * HW
    io = 3 * data * itemsize        # x, skip, out blocks (double-buffered below)
    f32_tmp = 2 * data * 4          # upcast copy + one f32 intermediate
    return 2 * io + f32_tmp


def _pick_c_tile(N, C, HW, itemsize, vmem_budget_bytes=24 * 1024 * 1024):
    """Channel tile: multiple of 8, divides C, fits VMEM, generation-aware."""
    if C % 8 != 0:
        return C  # single full-channel block (second-to-last dim == full dim)
    cands = [c for c in range(8, C + 1, 8) if C % c == 0]
    fitting = [c for c in cands
               if _block_footprint_bytes(N, c, HW, itemsize) <= vmem_budget_bytes]
    fitting = fitting or [cands[0]]

    n_cores = _num_tensorcores()
    grid = lambda c: C // c
    if n_cores >= 2:
        # Even grid, >= 3 steps per core -> per-core double-buffering overlap.
        good = [c for c in fitting
                if grid(c) % n_cores == 0 and grid(c) // n_cores >= 3]
        if good:
            return max(good)
        good = [c for c in fitting if grid(c) % n_cores == 0]
        if good:
            return max(good)
        return max(fitting)
    # Single TensorCore (v5e/v6e): largest fitting tile that still gives >= 2
    # grid steps (prologue DMA overlap); otherwise the largest fitting tile.
    good = [c for c in fitting if grid(c) >= 2]
    return max(good) if good else max(fitting)


# ---------------------------------------------------------------------------
# Wrapper
# ---------------------------------------------------------------------------
def batchnorm_add(x74, x67, gamma, beta):
    """x74, x67: (N, C, H, W). gamma, beta: (C,). Returns x67 + BN_train(x74)."""
    N, C, H, W = x74.shape
    HW = H * W
    itemsize = jnp.dtype(x74.dtype).itemsize

    c_tile = _pick_c_tile(N, C, HW, itemsize)
    grid = (C // c_tile,)
    inv_count = 1.0 / float(N * HW)

    # gamma/beta packed as one small resident (C, 2) f32 array.
    params = jnp.stack([gamma.astype(jnp.float32),
                        beta.astype(jnp.float32)], axis=1)            # (C, 2)

    # Tight VMEM limit: real double-buffered footprint + headroom, <= 32 MiB.
    vmem_limit = (_block_footprint_bytes(N, c_tile, HW, itemsize)
                  + 2 * params.size * 4 + (1 << 20))
    vmem_limit = int(max(min(vmem_limit, 32 * 1024 * 1024), 2 * 1024 * 1024))

    cost = pl.CostEstimate(
        flops=6 * N * C * HW,              # single-pass sums + normalize + add
        transcendentals=C,                 # one rsqrt per channel
        bytes_accessed=3 * N * C * HW * itemsize + params.size * 4,
    )

    if N == 1:
        # Free reshape to 2D; channels on sublanes, H*W on lanes.
        x_in = x74.reshape(C, HW)
        s_in = x67.reshape(C, HW)
        kernel = functools.partial(_bn_add_kernel_2d,
                                   c_tile=c_tile, inv_count=inv_count)
        data_spec = pl.BlockSpec((c_tile, HW), lambda c: (c, 0))
        out_shape = jax.ShapeDtypeStruct((C, HW), x74.dtype)
    else:
        x_in = x74.reshape(N, C, HW)
        s_in = x67.reshape(N, C, HW)
        kernel = functools.partial(_bn_add_kernel_3d,
                                   c_tile=c_tile, inv_count=inv_count)
        data_spec = pl.BlockSpec((N, c_tile, HW), lambda c: (0, c, 0))
        out_shape = jax.ShapeDtypeStruct((N, C, HW), x74.dtype)

    out = pl.pallas_call(
        kernel,
        out_shape=out_shape,
        grid=grid,
        in_specs=[
            data_spec,
            data_spec,
            pl.BlockSpec((C, 2), lambda c: (0, 0)),   # params resident in VMEM
        ],
        out_specs=data_spec,
        compiler_params=pltpu.CompilerParams(
            dimension_semantics=("parallel",),
            vmem_limit_bytes=vmem_limit,
        ),
        cost_estimate=cost,
    )(x_in, s_in, params)

    return out.reshape(N, C, H, W)


# ---------------------------------------------------------------------------
# Reference + test
# ---------------------------------------------------------------------------
def reference(x74, x67, gamma, beta):
    mean = jnp.mean(x74, axis=(0, 2, 3), keepdims=True)
    var = jnp.mean((x74 - mean) ** 2, axis=(0, 2, 3), keepdims=True)
    y = (x74 - mean) * lax.rsqrt(var + EPS)
    y = y * gamma.reshape(1, -1, 1, 1) + beta.reshape(1, -1, 1, 1)
    return x67 + y


if __name__ == "__main__":
    # Shapes from the original module: x74, x67 = (1, 240, 28, 28).
    N, C, H, W = 1, 240, 28, 28

    key = jax.random.PRNGKey(0)
    k1, k2, k3, k4 = jax.random.split(key, 4)
    x74 = jax.random.normal(k1, (N, C, H, W), dtype=jnp.float32)
    x67 = jax.random.normal(k2, (N, C, H, W), dtype=jnp.float32)
    # Deterministic synthetic affine parameters.
    gamma = 1.0 + 0.1 * jax.random.normal(k3, (C,), dtype=jnp.float32)
    beta = 0.1 * jax.random.normal(k4, (C,), dtype=jnp.float32)

    out = batchnorm_add(x74, x67, gamma, beta)
    out = jax.block_until_ready(out)

    ref = reference(x74, x67, gamma, beta)
    assert out.shape == (N, C, H, W)
    assert jnp.allclose(out, ref, atol=1e-4, rtol=1e-4), "mismatch vs reference"

    print("KERNEL_OK")
</pallas_src>

<mosaic_0001>
module attributes {stable_mosaic.version = 11 : i64} {
  func.func @_bn_add_kernel_2d(%arg0: i32, %arg1: memref<120x784xf32, #tpu.memory_space<vmem>>, %arg2: memref<120x784xf32, #tpu.memory_space<vmem>>, %arg3: memref<240x2xf32, #tpu.memory_space<vmem>>, %arg4: memref<120x784xf32, #tpu.memory_space<vmem>>) attributes {dimension_semantics = [#tpu.dimension_semantics<parallel>], iteration_bounds = array<i64: 2>, scalar_prefetch = 0 : i64, scratch_operands = 0 : i64, tpu.core_type = #tpu.core_type<tc>, window_params = [{transform_indices = @transform_0, window_bounds = array<i64: 120, 784>}, {transform_indices = @transform_1, window_bounds = array<i64: 120, 784>}, {pipeline_mode = #tpu.pipeline_mode<synchronous>, transform_indices = @transform_2, window_bounds = array<i64: 240, 2>}, {transform_indices = @transform_3, window_bounds = array<i64: 120, 784>}]} {
    %c0 = arith.constant 0 : index
    %c0_0 = arith.constant 0 : index
    %0 = vector.load %arg1[%c0, %c0_0] : memref<120x784xf32, #tpu.memory_space<vmem>>, vector<120x784xf32>
    %cst = arith.constant dense<0.000000e+00> : vector<120xf32>
    %1 = vector.multi_reduction <add>, %0, %cst [1] : vector<120x784xf32> to vector<120xf32>
    %2 = vector.shape_cast %1 : vector<120xf32> to vector<120x1xf32>
    %3 = arith.mulf %0, %0 : vector<120x784xf32>
    %cst_1 = arith.constant dense<0.000000e+00> : vector<120xf32>
    %4 = vector.multi_reduction <add>, %3, %cst_1 [1] : vector<120x784xf32> to vector<120xf32>
    %5 = vector.shape_cast %4 : vector<120xf32> to vector<120x1xf32>
    %cst_2 = arith.constant 0.00127551018 : f32
    %6 = vector.broadcast %cst_2 : f32 to vector<120x1xf32>
    %7 = arith.mulf %2, %6 : vector<120x1xf32>
    %cst_3 = arith.constant 0.00127551018 : f32
    %8 = vector.broadcast %cst_3 : f32 to vector<120x1xf32>
    %9 = arith.mulf %5, %8 : vector<120x1xf32>
    %10 = arith.mulf %7, %7 : vector<120x1xf32>
    %11 = arith.subf %9, %10 : vector<120x1xf32>
    %cst_4 = arith.constant 9.99999974E-6 : f32
    %12 = vector.broadcast %cst_4 : f32 to vector<120x1xf32>
    %13 = arith.addf %11, %12 : vector<120x1xf32>
    %14 = math.rsqrt %13 : vector<120x1xf32>
    %c120_i32 = arith.constant 120 : i32
    %15 = arith.muli %arg0, %c120_i32 : i32
    %16 = tpu.assume_multiple %15, 8 : i32
    %17 = arith.index_cast %16 : i32 to index
    %c0_5 = arith.constant 0 : index
    %18 = vector.load %arg3[%17, %c0_5] : memref<240x2xf32, #tpu.memory_space<vmem>>, vector<120x1xf32>
    %19 = arith.index_cast %16 : i32 to index
    %c1 = arith.constant 1 : index
    %20 = vector.load %arg3[%19, %c1] : memref<240x2xf32, #tpu.memory_space<vmem>>, vector<120x1xf32>
    %21 = arith.mulf %18, %14 : vector<120x1xf32>
    %22 = arith.mulf %7, %21 : vector<120x1xf32>
    %23 = arith.subf %20, %22 : vector<120x1xf32>
    %24 = vector.broadcast %21 : vector<120x1xf32> to vector<120x784xf32>
    %25 = arith.mulf %0, %24 : vector<120x784xf32>
    %26 = vector.broadcast %23 : vector<120x1xf32> to vector<120x784xf32>
    %27 = arith.addf %25, %26 : vector<120x784xf32>
    %c0_6 = arith.constant 0 : index
    %c0_7 = arith.constant 0 : index
    %28 = vector.load %arg2[%c0_6, %c0_7] : memref<120x784xf32, #tpu.memory_space<vmem>>, vector<120x784xf32>
    %29 = arith.addf %27, %28 : vector<120x784xf32>
    %c0_8 = arith.constant 0 : index
    %c0_9 = arith.constant 0 : index
    %30 = vector.load %arg4[%c0_8, %c0_9] : memref<120x784xf32, #tpu.memory_space<vmem>>, vector<120x784xf32>
    tpu.vector_store %arg4[%c0_8, %c0_9], %29 {strides = array<i32>} : memref<120x784xf32, #tpu.memory_space<vmem>>, vector<120x784xf32>,
    return
  }
  func.func @transform_0(%arg0: i32) -> (i32, i32) {
    %c0_i32 = arith.constant 0 : i32
    %c0_i32_0 = arith.constant 0 : i32
    return %arg0, %c0_i32 : i32, i32
  }
  func.func @transform_1(%arg0: i32) -> (i32, i32) {
    %c0_i32 = arith.constant 0 : i32
    %c0_i32_0 = arith.constant 0 : i32
    return %arg0, %c0_i32 : i32, i32
  }
  func.func @transform_2(%arg0: i32) -> (i32, i32) {
    %c0_i32 = arith.constant 0 : i32
    %c0_i32_0 = arith.constant 0 : i32
    %c0_i32_1 = arith.constant 0 : i32
    return %c0_i32, %c0_i32_0 : i32, i32
  }
  func.func @transform_3(%arg0: i32) -> (i32, i32) {
    %c0_i32 = arith.constant 0 : i32
    %c0_i32_0 = arith.constant 0 : i32
    return %arg0, %c0_i32 : i32, i32
  }
}

</mosaic_0001>

<llo_original>
// kernel: tpu_custom_call.1
$region0: #{tpu_custom_call.1}
  #allocation0 [shape = 'u32[]', space=smem, size = 0x4, offset = 0x4, fixed_abs, tag = 'smem constant byte address 0x4 - core index']
  #allocation1 [shape = 'u32[144,128]{1,0:T(1,128)}', space=vmem, size = 0x12000, scoped, tag = 'internal scratch']
  %s0 = inlined_call_operand.vmem [shape: f32[240,784], index: 0, kind: input, shape index: {}]
  %s1 = inlined_call_operand.vmem [shape: f32[240,784], index: 1, kind: input, shape index: {}]
  %s2 = inlined_call_operand.vmem [shape: f32[240,2], index: 2, kind: input, shape index: {}]
  %s3 = inlined_call_operand.vmem [shape: f32[240,784], index: 3, kind: output, shape index: {}]
  %s4 = sld [smem:[#allocation0]]
  $region45: #{tpu_custom_call.1} parent=0
    _
  %s6 = ssub.s32 1, %s4
  %s7 = scalar_select 0, %s6, %s4
  loop: start=0, step=1, limit=4
  $region2: #{tpu_custom_call.1} parent=0 // loop_pre_header
    _
  $region3: #{tpu_custom_call.1} parent=0 // loop_header
    %s9 = sphi 0, %s13
    %p10 = scmp.ge.s32.totalorder %s9, 4
    %s19 = sphi 0, %s21
    %s22 = sphi 0, %s19
    %s23 = sphi 0, %s22
    %s39 = sphi 0, %s23
    %s45 = sphi 0, %s47
    %s48 = sphi 0, %s45
    %s49 = sphi 0, %s48
    %s65 = sphi 0, %s49
    %s69 = sphi 0, %s69
    %s71 = sphi 0, %s69
    %s72 = sphi 0, %s71
    %s86 = sphi 0, %s72
    %s92 = sphi 0, %s94
    %s95 = sphi 0, %s92
    %s96 = sphi 0, %s95
    %s112 = sphi 0, %s96
  $region4: #{tpu_custom_call.1} parent=0 // loop_header_branch
    %12 = sbr.rel (%p10) target = $region8
  $region5: #{tpu_custom_call.1} parent=0 // loop_body
    %s14 = ssub.s32 %s9, 1
    %s15 = ssub.s32 %s9, 2
    %s16 = sadd.s32 %s9, 1
    %s17 = ssub.s32 %s9, %s16
    %p18 = scmp.eq.s32.totalorder %s17, 0
    %s20 = sadd.s32 %s19, 1
    %s21 = scalar_select %p18, %s19, %s20
    %p24 = pneg %p18
    %p25 = scmp.eq.s32.totalorder %s9, 1
    %p26 = por %p24, %p25
    %p27 = scmp.ne.s32.totalorder %s19, %s22
    %p28 = scmp.eq.s32.totalorder %s9, 0
    %p29 = por %p27, %p28
    %p30 = scmp.ne.s32.totalorder %s19, %s22
    %p31 = scmp.eq.s32.totalorder %s14, 1
    %p32 = por %p30, %p31
    %p33 = scmp.ne.s32.totalorder %s22, %s23
    %p34 = scmp.eq.s32.totalorder %s14, 0
    %p35 = por %p33, %p34
    %p36 = scmp.ne.s32.totalorder %s22, %s23
    %p37 = scmp.eq.s32.totalorder %s15, 1
    %p38 = por %p36, %p37
    %p40 = scmp.ne.s32.totalorder %s23, %s39
    %p41 = scmp.eq.s32.totalorder %s15, 0
    %p42 = por %p40, %p41
    %s43 = ssub.s32 %s9, %s16
    %p44 = scmp.eq.s32.totalorder %s43, 0
    %s46 = sadd.s32 %s45, 1
    %s47 = scalar_select %p44, %s45, %s46
    %p50 = pneg %p44
    %p51 = scmp.eq.s32.totalorder %s9, 1
    %p52 = por %p50, %p51
    %p53 = scmp.ne.s32.totalorder %s45, %s48
    %p54 = scmp.eq.s32.totalorder %s9, 0
    %p55 = por %p53, %p54
    %p56 = scmp.ne.s32.totalorder %s45, %s48
    %p57 = scmp.eq.s32.totalorder %s14, 1
    %p58 = por %p56, %p57
    %p59 = scmp.ne.s32.totalorder %s48, %s49
    %p60 = scmp.eq.s32.totalorder %s14, 0
    %p61 = por %p59, %p60
    %p62 = scmp.ne.s32.totalorder %s48, %s49
    %p63 = scmp.eq.s32.totalorder %s15, 1
    %p64 = por %p62, %p63
    %p66 = scmp.ne.s32.totalorder %s49, %s65
    %p67 = scmp.eq.s32.totalorder %s15, 0
    %p68 = por %p66, %p67
    %s70 = sadd.s32 %s69, 1
    %p73 = scmp.eq.s32.totalorder %s9, 1
    %p74 = scmp.ne.s32.totalorder %s69, %s71
    %p75 = scmp.eq.s32.totalorder %s9, 0
    %p76 = por %p74, %p75
    %p77 = scmp.ne.s32.totalorder %s69, %s71
    %p78 = scmp.eq.s32.totalorder %s14, 1
    %p79 = por %p77, %p78
    %p80 = scmp.ne.s32.totalorder %s71, %s72
    %p81 = scmp.eq.s32.totalorder %s14, 0
    %p82 = por %p80, %p81
    %p83 = scmp.ne.s32.totalorder %s71, %s72
    %p84 = scmp.eq.s32.totalorder %s15, 1
    %p85 = por %p83, %p84
    %p87 = scmp.ne.s32.totalorder %s72, %s86
    %p88 = scmp.eq.s32.totalorder %s15, 0
    %p89 = por %p87, %p88
    %s90 = ssub.s32 %s9, %s16
    %p91 = scmp.eq.s32.totalorder %s90, 0
    %s93 = sadd.s32 %s92, 1
    %s94 = scalar_select %p91, %s92, %s93
    %p97 = pneg %p91
    %p98 = scmp.eq.s32.totalorder %s9, 1
    %p99 = por %p97, %p98
    %p100 = scmp.ne.s32.totalorder %s92, %s95
    %p101 = scmp.eq.s32.totalorder %s9, 0
    %p102 = por %p100, %p101
    %p103 = scmp.ne.s32.totalorder %s92, %s95
    %p104 = scmp.eq.s32.totalorder %s14, 1
    %p105 = por %p103, %p104
    %p106 = scmp.ne.s32.totalorder %s95, %s96
    %p107 = scmp.eq.s32.totalorder %s14, 0
    %p108 = por %p106, %p107
    %p109 = scmp.ne.s32.totalorder %s95, %s96
    %p110 = scmp.eq.s32.totalorder %s15, 1
    %p111 = por %p109, %p110
    %p113 = scmp.ne.s32.totalorder %s96, %s112
    %p114 = scmp.eq.s32.totalorder %s15, 0
    %p115 = por %p113, %p114
    %p116 = scmp.le.s32.totalorder 1, %s9
    %p117 = scmp.lt.s32.totalorder %s9, 3
    %p118 = pnand %p116, %p117
    %p119 = pneg %p118
    // Predicated region
    $region9: #{tpu_custom_call.1} parent=5 // pred_check
      _
    $region10: #{tpu_custom_call.1} parent=5 // pred_check_branch
      %121 = sbr.rel (%p118) target = $region12
    $region11: #{tpu_custom_call.1} parent=5 // pred_region
      %s122 = ssub.s32 %s9, 1
      // Predicated region
      $region13: #{tpu_custom_call.1} parent=11 // pred_check
        %p123 = pneg %p82
      $region14: #{tpu_custom_call.1} parent=11 // pred_check_branch
        %125 = sbr.rel (%p123) target = $region16
      $region15: #{tpu_custom_call.1} parent=11 // pred_region
        _
      $region16: #{tpu_custom_call.1} parent=11 // pred_fallthru
        _
    $region12: #{tpu_custom_call.1} parent=5 // pred_fallthru
      _
    %p126 = scmp.lt.s32.totalorder %s9, 2
    // Predicated region
    $region17: #{tpu_custom_call.1} parent=5 // pred_check
      %p127 = pneg %p126
    $region18: #{tpu_custom_call.1} parent=5 // pred_check_branch
      %129 = sbr.rel (%p127) target = $region20
    $region19: #{tpu_custom_call.1} parent=5 // pred_region
      // Predicated region
      $region21: #{tpu_custom_call.1} parent=19 // pred_check
        %p130 = pneg %p29
      $region22: #{tpu_custom_call.1} parent=19 // pred_check_branch
        %132 = sbr.rel (%p130) target = $region24
      $region23: #{tpu_custom_call.1} parent=19 // pred_region
        %s133 = smul.u32 15, %s9
        %p134 = scmp.lt.s32.totalorder %s133, 29
        %s135 = scalar_select %p134, %s133, 29
        %s136 = smul.addr %s135, 7
        %s137 = smul.addr %s136, 8
        %s138 = scalar_lea.vmem %s0, %s137
        %s139 = smul.u32 15, %s9
      $region24: #{tpu_custom_call.1} parent=19 // pred_fallthru
        _
      // Predicated region
      $region25: #{tpu_custom_call.1} parent=19 // pred_check
        %p140 = pneg %p55
      $region26: #{tpu_custom_call.1} parent=19 // pred_check_branch
        %142 = sbr.rel (%p140) target = $region28
      $region27: #{tpu_custom_call.1} parent=19 // pred_region
        %s143 = smul.u32 15, %s9
        %p144 = scmp.lt.s32.totalorder %s143, 29
        %s145 = scalar_select %p144, %s143, 29
        %s146 = smul.addr %s145, 7
        %s147 = smul.addr %s146, 8
        %s148 = scalar_lea.vmem %s1, %s147
        %s149 = smul.u32 15, %s9
      $region28: #{tpu_custom_call.1} parent=19 // pred_fallthru
        _
    $region20: #{tpu_custom_call.1} parent=5 // pred_fallthru
      _
    %p150 = scmp.le.s32.totalorder 1, %s9
    %p151 = scmp.lt.s32.totalorder %s9, 3
    %p152 = pnand %p150, %p151
    %p153 = pneg %p152
    // Predicated region
    $region29: #{tpu_custom_call.1} parent=5 // pred_check
      _
    $region30: #{tpu_custom_call.1} parent=5 // pred_check_branch
      %155 = sbr.rel (%p152) target = $region32
    $region31: #{tpu_custom_call.1} parent=5 // pred_region
      %s156 = ssub.s32 %s9, 1
      %s157 = smul.u32 15, %s14
      %p158 = scmp.lt.s32.totalorder %s157, 29
      %s159 = scalar_select %p158, %s157, 29
      %s160 = smul.addr %s159, 7
      %s161 = smul.addr %s160, 8
      %s162 = scalar_lea.vmem %s0, %s161
      %p163 = pneg %p35
      %p164 = pneg %p32
      %s165 = smul.u32 15, %s14
      %p166 = scmp.lt.s32.totalorder %s165, 29
      %s167 = scalar_select %p166, %s165, 29
      %s168 = smul.addr %s167, 7
      %s169 = smul.addr %s168, 8
      %s170 = scalar_lea.vmem %s1, %s169
      %p171 = pneg %p61
      %p172 = pneg %p58
      %p173 = pneg %p82
      %p174 = pneg %p79
      %p175 = pneg %p108
      %p176 = pneg %p105
      %s177 = smul.u32 15, %s14
      %p178 = scmp.lt.s32.totalorder %s177, 29
      %s179 = scalar_select %p178, %s177, 29
      %s180 = smul.addr %s179, 7
      %s181 = smul.addr %s180, 8
      %s182 = scalar_lea.vmem %s3, %s181
      %s183 = smul.u32 15, %s14
      %p184 = scmp.lt.s32.totalorder %s183, 29
      %s185 = scalar_select %p184, %s183, 29
      %s186 = smul.addr %s185, 7
      %s187 = smul.addr %s186, 8
      %s188 = scalar_lea.vmem %s0, %s187
      %s189 = smul.u32 15, %s14
      %s190 = smul.u32 15, %s14
      %p191 = scmp.lt.s32.totalorder %s190, 29
      %s192 = scalar_select %p191, %s190, 29
      %s193 = smul.addr %s192, 7
      %s194 = smul.addr %s193, 8
      %s195 = scalar_lea.vmem %s1, %s194
      %s196 = smul.u32 15, %s14
      %s197 = smul.u32 15, %s14
      %p198 = scmp.lt.s32.totalorder %s197, 29
      %s199 = scalar_select %p198, %s197, 29
      %s200 = smul.addr %s199, 7
      %s201 = smul.addr %s200, 8
      %s202 = scalar_lea.vmem %s3, %s201
      %s203 = smul.u32 15, %s14
      %v204 = vld [vmem:[%s188] sm:$0xff]
      %v205 = vld [vmem:[%s188 + $0x8] sm:$0xff]
      %v206 = vld [vmem:[%s188 + $0x10] sm:$0xff]
      %v207 = vld [vmem:[%s188 + $0x18] sm:$0xff]
      %v208 = vld [vmem:[%s188 + $0x20] sm:$0xff]
      %v209 = vld [vmem:[%s188 + $0x28] sm:$0xff]
      %v210 = vld [vmem:[%s188 + $0x30] sm:$0xff]
      %v211 = vld [vmem:[%s188 + $0x38] sm:$0xff]
      %v212 = vld [vmem:[%s188 + $0x40] sm:$0xff]
      %v213 = vld [vmem:[%s188 + $0x48] sm:$0xff]
      %v214 = vld [vmem:[%s188 + $0x50] sm:$0xff]
      %v215 = vld [vmem:[%s188 + $0x58] sm:$0xff]
      %v216 = vld [vmem:[%s188 + $0x60] sm:$0xff]
      %v217 = vld [vmem:[%s188 + $0x68] sm:$0xff]
      %v218 = vld [vmem:[%s188 + $0x70] sm:$0xff]
      %v219 = vld [vmem:[%s188 + $0x78] sm:$0xff]
      %v220 = vld [vmem:[%s188 + $0x80] sm:$0xff]
      %v221 = vld [vmem:[%s188 + $0x88] sm:$0xff]
      %v222 = vld [vmem:[%s188 + $0x90] sm:$0xff]
      %v223 = vld [vmem:[%s188 + $0x98] sm:$0xff]
      %v224 = vld [vmem:[%s188 + $0xa0] sm:$0xff]
      %v225 = vld [vmem:[%s188 + $0xa8] sm:$0xff]
      %v226 = vld [vmem:[%s188 + $0xb0] sm:$0xff]
      %v227 = vld [vmem:[%s188 + $0xb8] sm:$0xff]
      %v228 = vld [vmem:[%s188 + $0xc0] sm:$0xff]
      %v229 = vld [vmem:[%s188 + $0xc8] sm:$0xff]
      %v230 = vld [vmem:[%s188 + $0xd0] sm:$0xff]
      %v231 = vld [vmem:[%s188 + $0xd8] sm:$0xff]
      %v232 = vld [vmem:[%s188 + $0xe0] sm:$0xff]
      %v233 = vld [vmem:[%s188 + $0xe8] sm:$0xff]
      %v234 = vld [vmem:[%s188 + $0xf0] sm:$0xff]
      %v235 = vld [vmem:[%s188 + $0xf8] sm:$0xff]
      %v236 = vld [vmem:[%s188 + $0x100] sm:$0xff]
      %v237 = vld [vmem:[%s188 + $0x108] sm:$0xff]
      %v238 = vld [vmem:[%s188 + $0x110] sm:$0xff]
      %v239 = vld [vmem:[%s188 + $0x118] sm:$0xff]
      %v240 = vld [vmem:[%s188 + $0x120] sm:$0xff]
      %v241 = vld [vmem:[%s188 + $0x128] sm:$0xff]
      %v242 = vld [vmem:[%s188 + $0x130] sm:$0xff]
      %v243 = vld [vmem:[%s188 + $0x138] sm:$0xff]
      %v244 = vld [vmem:[%s188 + $0x140] sm:$0xff]
      %v245 = vld [vmem:[%s188 + $0x148] sm:$0xff]
      %v246 = vld [vmem:[%s188 + $0x150] sm:$0xff]
      %v247 = vld [vmem:[%s188 + $0x158] sm:$0xff]
      %v248 = vld [vmem:[%s188 + $0x160] sm:$0xff]
      %v249 = vld [vmem:[%s188 + $0x168] sm:$0xff]
      %v250 = vld [vmem:[%s188 + $0x170] sm:$0xff]
      %v251 = vld [vmem:[%s188 + $0x178] sm:$0xff]
      %v252 = vld [vmem:[%s188 + $0x180] sm:$0xff]
      %v253 = vld [vmem:[%s188 + $0x188] sm:$0xff]
      %v254 = vld [vmem:[%s188 + $0x190] sm:$0xff]
      %v255 = vld [vmem:[%s188 + $0x198] sm:$0xff]
      %v256 = vld [vmem:[%s188 + $0x1a0] sm:$0xff]
      %v257 = vld [vmem:[%s188 + $0x1a8] sm:$0xff]
      %v258 = vld [vmem:[%s188 + $0x1b0] sm:$0xff]
      %v259 = vld [vmem:[%s188 + $0x1b8] sm:$0xff]
      %v260 = vld [vmem:[%s188 + $0x1c0] sm:$0xff]
      %v261 = vld [vmem:[%s188 + $0x1c8] sm:$0xff]
      %v262 = vld [vmem:[%s188 + $0x1d0] sm:$0xff]
      %v263 = vld [vmem:[%s188 + $0x1d8] sm:$0xff]
      %v264 = vld [vmem:[%s188 + $0x1e0] sm:$0xff]
      %v265 = vld [vmem:[%s188 + $0x1e8] sm:$0xff]
      %v266 = vld [vmem:[%s188 + $0x1f0] sm:$0xff]
      %v267 = vld [vmem:[%s188 + $0x1f8] sm:$0xff]
      %v268 = vld [vmem:[%s188 + $0x200] sm:$0xff]
      %v269 = vld [vmem:[%s188 + $0x208] sm:$0xff]
      %v270 = vld [vmem:[%s188 + $0x210] sm:$0xff]
      %v271 = vld [vmem:[%s188 + $0x218] sm:$0xff]
      %v272 = vld [vmem:[%s188 + $0x220] sm:$0xff]
      %v273 = vld [vmem:[%s188 + $0x228] sm:$0xff]
      %v274 = vld [vmem:[%s188 + $0x230] sm:$0xff]
      %v275 = vld [vmem:[%s188 + $0x238] sm:$0xff]
      %v276 = vld [vmem:[%s188 + $0x240] sm:$0xff]
      %v277 = vld [vmem:[%s188 + $0x248] sm:$0xff]
      %v278 = vld [vmem:[%s188 + $0x250] sm:$0xff]
      %v279 = vld [vmem:[%s188 + $0x258] sm:$0xff]
      %v280 = vld [vmem:[%s188 + $0x260] sm:$0xff]
      %v281 = vld [vmem:[%s188 + $0x268] sm:$0xff]
      %v282 = vld [vmem:[%s188 + $0x270] sm:$0xff]
      %v283 = vld [vmem:[%s188 + $0x278] sm:$0xff]
      %v284 = vld [vmem:[%s188 + $0x280] sm:$0xff]
      %v285 = vld [vmem:[%s188 + $0x288] sm:$0xff]
      %v286 = vld [vmem:[%s188 + $0x290] sm:$0xff]
      %v287 = vld [vmem:[%s188 + $0x298] sm:$0xff]
      %v288 = vld [vmem:[%s188 + $0x2a0] sm:$0xff]
      %v289 = vld [vmem:[%s188 + $0x2a8] sm:$0xff]
      %v290 = vld [vmem:[%s188 + $0x2b0] sm:$0xff]
      %v291 = vld [vmem:[%s188 + $0x2b8] sm:$0xff]
      %v292 = vld [vmem:[%s188 + $0x2c0] sm:$0xff]
      %v293 = vld [vmem:[%s188 + $0x2c8] sm:$0xff]
      %v294 = vld [vmem:[%s188 + $0x2d0] sm:$0xff]
      %v295 = vld [vmem:[%s188 + $0x2d8] sm:$0xff]
      %v296 = vld [vmem:[%s188 + $0x2e0] sm:$0xff]
      %v297 = vld [vmem:[%s188 + $0x2e8] sm:$0xff]
      %v298 = vld [vmem:[%s188 + $0x2f0] sm:$0xff]
      %v299 = vld [vmem:[%s188 + $0x2f8] sm:$0xff]
      %v300 = vld [vmem:[%s188 + $0x300] sm:$0xff]
      %v301 = vld [vmem:[%s188 + $0x308] sm:$0xff]
      %v302 = vld [vmem:[%s188 + $0x310] sm:$0xff]
      %v303 = vld [vmem:[%s188 + $0x318] sm:$0xff]
      %v304 = vld [vmem:[%s188 + $0x320] sm:$0xff]
      %v305 = vld [vmem:[%s188 + $0x328] sm:$0xff]
      %v306 = vld [vmem:[%s188 + $0x330] sm:$0xff]
      %v307 = vld [vmem:[%s188 + $0x338] sm:$0xff]
      %v308 = vld [vmem:[%s188 + $0x340] sm:$0xff]
      %v309 = vadd.f32 %v204, %v205
      %v310 = vadd.f32 %v309, %v206
      %v311 = vadd.f32 %v310, %v207
      %v312 = vadd.f32 %v311, %v208
      %v313 = vadd.f32 %v312, %v209
      %vm314 = vcmask 130048
      %v315 = vsel %vm314, %v210, 0.0
      %v316 = vadd.f32 %v313, %v315
      %317 = vadd.xlane.f32.xlu0 %v316
      %v318 = vpop.xlane.xlu0 %317
      %v319 = vadd.f32 %v211, %v212
      %v320 = vadd.f32 %v319, %v213
      %v321 = vadd.f32 %v320, %v214
      %v322 = vadd.f32 %v321, %v215
      %v323 = vadd.f32 %v322, %v216
      %v324 = vsel %vm314, %v217, 0.0
      %v325 = vadd.f32 %v323, %v324
      %326 = vadd.xlane.f32.xlu0 %v325
      %v327 = vpop.xlane.xlu0 %326
      %v328 = vadd.f32 %v218, %v219
      %v329 = vadd.f32 %v328, %v220
      %v330 = vadd.f32 %v329, %v221
      %v331 = vadd.f32 %v330, %v222
      %v332 = vadd.f32 %v331, %v223
      %v333 = vsel %vm314, %v224, 0.0
      %v334 = vadd.f32 %v332, %v333
      %335 = vadd.xlane.f32.xlu0 %v334
      %v336 = vpop.xlane.xlu0 %335
      %v337 = vadd.f32 %v225, %v226
      %v338 = vadd.f32 %v337, %v227
      %v339 = vadd.f32 %v338, %v228
      %v340 = vadd.f32 %v339, %v229
      %v341 = vadd.f32 %v340, %v230
      %v342 = vsel %vm314, %v231, 0.0
      %v343 = vadd.f32 %v341, %v342
      %344 = vadd.xlane.f32.xlu0 %v343
      %v345 = vpop.xlane.xlu0 %344
      %v346 = vadd.f32 %v232, %v233
      %v347 = vadd.f32 %v346, %v234
      %v348 = vadd.f32 %v347, %v235
      %v349 = vadd.f32 %v348, %v236
      %v350 = vadd.f32 %v349, %v237
      %v351 = vsel %vm314, %v238, 0.0
      %v352 = vadd.f32 %v350, %v351
      %353 = vadd.xlane.f32.xlu0 %v352
      %v354 = vpop.xlane.xlu0 %353
      %v355 = vadd.f32 %v239, %v240
      %v356 = vadd.f32 %v355, %v241
      %v357 = vadd.f32 %v356, %v242
      %v358 = vadd.f32 %v357, %v243
      %v359 = vadd.f32 %v358, %v244
      %v360 = vsel %vm314, %v245, 0.0
      %v361 = vadd.f32 %v359, %v360
      %362 = vadd.xlane.f32.xlu0 %v361
      %v363 = vpop.xlane.xlu0 %362
      %v364 = vadd.f32 %v246, %v247
      %v365 = vadd.f32 %v364, %v248
      %v366 = vadd.f32 %v365, %v249
      %v367 = vadd.f32 %v366, %v250
      %v368 = vadd.f32 %v367, %v251
      %v369 = vsel %vm314, %v252, 0.0
      %v370 = vadd.f32 %v368, %v369
      %371 = vadd.xlane.f32.xlu0 %v370
      %v372 = vpop.xlane.xlu0 %371
      %v373 = vadd.f32 %v253, %v254
      %v374 = vadd.f32 %v373, %v255
      %v375 = vadd.f32 %v374, %v256
      %v376 = vadd.f32 %v375, %v257
      %v377 = vadd.f32 %v376, %v258
      %v378 = vsel %vm314, %v259, 0.0
      %v379 = vadd.f32 %v377, %v378
      %380 = vadd.xlane.f32.xlu0 %v379
      %v381 = vpop.xlane.xlu0 %380
      %v382 = vadd.f32 %v260, %v261
      %v383 = vadd.f32 %v382, %v262
      %v384 = vadd.f32 %v383, %v263
      %v385 = vadd.f32 %v384, %v264
      %v386 = vadd.f32 %v385, %v265
      %v387 = vsel %vm314, %v266, 0.0
      %v388 = vadd.f32 %v386, %v387
      %389 = vadd.xlane.f32.xlu0 %v388
      %v390 = vpop.xlane.xlu0 %389
      %v391 = vadd.f32 %v267, %v268
      %v392 = vadd.f32 %v391, %v269
      %v393 = vadd.f32 %v392, %v270
      %v394 = vadd.f32 %v393, %v271
      %v395 = vadd.f32 %v394, %v272
      %v396 = vsel %vm314, %v273, 0.0
      %v397 = vadd.f32 %v395, %v396
      %398 = vadd.xlane.f32.xlu0 %v397
      %v399 = vpop.xlane.xlu0 %398
      %v400 = vadd.f32 %v274, %v275
      %v401 = vadd.f32 %v400, %v276
      %v402 = vadd.f32 %v401, %v277
      %v403 = vadd.f32 %v402, %v278
      %v404 = vadd.f32 %v403, %v279
      %v405 = vsel %vm314, %v280, 0.0
      %v406 = vadd.f32 %v404, %v405
      %407 = vadd.xlane.f32.xlu0 %v406
      %v408 = vpop.xlane.xlu0 %407
      %v409 = vadd.f32 %v281, %v282
      %v410 = vadd.f32 %v409, %v283
      %v411 = vadd.f32 %v410, %v284
      %v412 = vadd.f32 %v411, %v285
      %v413 = vadd.f32 %v412, %v286
      %v414 = vsel %vm314, %v287, 0.0
      %v415 = vadd.f32 %v413, %v414
      %416 = vadd.xlane.f32.xlu0 %v415
      %v417 = vpop.xlane.xlu0 %416
      %v418 = vadd.f32 %v288, %v289
      %v419 = vadd.f32 %v418, %v290
      %v420 = vadd.f32 %v419, %v291
      %v421 = vadd.f32 %v420, %v292
      %v422 = vadd.f32 %v421, %v293
      %v423 = vsel %vm314, %v294, 0.0
      %v424 = vadd.f32 %v422, %v423
      %425 = vadd.xlane.f32.xlu0 %v424
      %v426 = vpop.xlane.xlu0 %425
      %v427 = vadd.f32 %v295, %v296
      %v428 = vadd.f32 %v427, %v297
      %v429 = vadd.f32 %v428, %v298
      %v430 = vadd.f32 %v429, %v299
      %v431 = vadd.f32 %v430, %v300
      %v432 = vsel %vm314, %v301, 0.0
      %v433 = vadd.f32 %v431, %v432
      %434 = vadd.xlane.f32.xlu0 %v433
      %v435 = vpop.xlane.xlu0 %434
      %v436 = vadd.f32 %v302, %v303
      %v437 = vadd.f32 %v436, %v304
      %v438 = vadd.f32 %v437, %v305
      %v439 = vadd.f32 %v438, %v306
      %v440 = vadd.f32 %v439, %v307
      %v441 = vsel %vm314, %v308, 0.0
      %v442 = vadd.f32 %v440, %v441
      %443 = vadd.xlane.f32.xlu0 %v442
      %v444 = vpop.xlane.xlu0 %443
      %v445 = vmul.f32 %v204, %v204
      %v446 = vmul.f32 %v205, %v205
      %v447 = vmul.f32 %v206, %v206
      %v448 = vmul.f32 %v207, %v207
      %v449 = vmul.f32 %v208, %v208
      %v450 = vmul.f32 %v209, %v209
      %v451 = vmul.f32 %v210, %v210
      %v452 = vmul.f32 %v211, %v211
      %v453 = vmul.f32 %v212, %v212
      %v454 = vmul.f32 %v213, %v213
      %v455 = vmul.f32 %v214, %v214
      %v456 = vmul.f32 %v215, %v215
      %v457 = vmul.f32 %v216, %v216
      %v458 = vmul.f32 %v217, %v217
      %v459 = vmul.f32 %v218, %v218
      %v460 = vmul.f32 %v219, %v219
      %v461 = vmul.f32 %v220, %v220
      %v462 = vmul.f32 %v221, %v221
      %v463 = vmul.f32 %v222, %v222
      %v464 = vmul.f32 %v223, %v223
      %v465 = vmul.f32 %v224, %v224
      %v466 = vmul.f32 %v225, %v225
      %v467 = vmul.f32 %v226, %v226
      %v468 = vmul.f32 %v227, %v227
      %v469 = vmul.f32 %v228, %v228
      %v470 = vmul.f32 %v229, %v229
      %v471 = vmul.f32 %v230, %v230
      %v472 = vmul.f32 %v231, %v231
      %v473 = vmul.f32 %v232, %v232
      %v474 = vmul.f32 %v233, %v233
      %v475 = vmul.f32 %v234, %v234
      %v476 = vmul.f32 %v235, %v235
      %v477 = vmul.f32 %v236, %v236
      %v478 = vmul.f32 %v237, %v237
      %v479 = vmul.f32 %v238, %v238
      %v480 = vmul.f32 %v239, %v239
      %v481 = vmul.f32 %v240, %v240
      %v482 = vmul.f32 %v241, %v241
      %v483 = vmul.f32 %v242, %v242
      %v484 = vmul.f32 %v243, %v243
      %v485 = vmul.f32 %v244, %v244
      %v486 = vmul.f32 %v245, %v245
      %v487 = vmul.f32 %v246, %v246
      %v488 = vmul.f32 %v247, %v247
      %v489 = vmul.f32 %v248, %v248
      %v490 = vmul.f32 %v249, %v249
      %v491 = vmul.f32 %v250, %v250
      %v492 = vmul.f32 %v251, %v251
      %v493 = vmul.f32 %v252, %v252
      %v494 = vmul.f32 %v253, %v253
      %v495 = vmul.f32 %v254, %v254
      %v496 = vmul.f32 %v255, %v255
      %v497 = vmul.f32 %v256, %v256
      %v498 = vmul.f32 %v257, %v257
      %v499 = vmul.f32 %v258, %v258
      %v500 = vmul.f32 %v259, %v259
      %v501 = vmul.f32 %v260, %v260
      %v502 = vmul.f32 %v261, %v261
      %v503 = vmul.f32 %v262, %v262
      %v504 = vmul.f32 %v263, %v263
      %v505 = vmul.f32 %v264, %v264
      %v506 = vmul.f32 %v265, %v265
      %v507 = vmul.f32 %v266, %v266
      %v508 = vmul.f32 %v267, %v267
      %v509 = vmul.f32 %v268, %v268
      %v510 = vmul.f32 %v269, %v269
      %v511 = vmul.f32 %v270, %v270
      %v512 = vmul.f32 %v271, %v271
      %v513 = vmul.f32 %v272, %v272
      %v514 = vmul.f32 %v273, %v273
      %v515 = vmul.f32 %v274, %v274
      %v516 = vmul.f32 %v275, %v275
      %v517 = vmul.f32 %v276, %v276
      %v518 = vmul.f32 %v277, %v277
      %v519 = vmul.f32 %v278, %v278
      %v520 = vmul.f32 %v279, %v279
      %v521 = vmul.f32 %v280, %v280
      %v522 = vmul.f32 %v281, %v281
      %v523 = vmul.f32 %v282, %v282
      %v524 = vmul.f32 %v283, %v283
      %v525 = vmul.f32 %v284, %v284
      %v526 = vmul.f32 %v285, %v285
      %v527 = vmul.f32 %v286, %v286
      %v528 = vmul.f32 %v287, %v287
      %v529 = vmul.f32 %v288, %v288
      %v530 = vmul.f32 %v289, %v289
      %v531 = vmul.f32 %v290, %v290
      %v532 = vmul.f32 %v291, %v291
      %v533 = vmul.f32 %v292, %v292
      %v534 = vmul.f32 %v293, %v293
      %v535 = vmul.f32 %v294, %v294
      %v536 = vmul.f32 %v295, %v295
      %v537 = vmul.f32 %v296, %v296
      %v538 = vmul.f32 %v297, %v297
      %v539 = vmul.f32 %v298, %v298
      %v540 = vmul.f32 %v299, %v299
      %v541 = vmul.f32 %v300, %v300
      %v542 = vmul.f32 %v301, %v301
      %v543 = vmul.f32 %v302, %v302
      %v544 = vmul.f32 %v303, %v303
      %v545 = vmul.f32 %v304, %v304
      %v546 = vmul.f32 %v305, %v305
      %v547 = vmul.f32 %v306, %v306
      %v548 = vmul.f32 %v307, %v307
      %v549 = vmul.f32 %v308, %v308
      %v550 = vadd.f32 %v445, %v446
      %v551 = vadd.f32 %v550, %v447
      %v552 = vadd.f32 %v551, %v448
      %v553 = vadd.f32 %v552, %v449
      %v554 = vadd.f32 %v553, %v450
      %v555 = vsel %vm314, %v451, 0.0
      %v556 = vadd.f32 %v554, %v555
      %557 = vadd.xlane.f32.xlu0 %v556
      %v558 = vpop.xlane.xlu0 %557
      %v559 = vadd.f32 %v452, %v453
      %v560 = vadd.f32 %v559, %v454
      %v561 = vadd.f32 %v560, %v455
      %v562 = vadd.f32 %v561, %v456
      %v563 = vadd.f32 %v562, %v457
      %v564 = vsel %vm314, %v458, 0.0
      %v565 = vadd.f32 %v563, %v564
      %566 = vadd.xlane.f32.xlu0 %v565
      %v567 = vpop.xlane.xlu0 %566
      %v568 = vadd.f32 %v459, %v460
      %v569 = vadd.f32 %v568, %v461
      %v570 = vadd.f32 %v569, %v462
      %v571 = vadd.f32 %v570, %v463
      %v572 = vadd.f32 %v571, %v464
      %v573 = vsel %vm314, %v465, 0.0
      %v574 = vadd.f32 %v572, %v573
      %575 = vadd.xlane.f32.xlu0 %v574
      %v576 = vpop.xlane.xlu0 %575
      %v577 = vadd.f32 %v466, %v467
      %v578 = vadd.f32 %v577, %v468
      %v579 = vadd.f32 %v578, %v469
      %v580 = vadd.f32 %v579, %v470
      %v581 = vadd.f32 %v580, %v471
      %v582 = vsel %vm314, %v472, 0.0
      %v583 = vadd.f32 %v581, %v582
      %584 = vadd.xlane.f32.xlu0 %v583
      %v585 = vpop.xlane.xlu0 %584
      %v586 = vadd.f32 %v473, %v474
      %v587 = vadd.f32 %v586, %v475
      %v588 = vadd.f32 %v587, %v476
      %v589 = vadd.f32 %v588, %v477
      %v590 = vadd.f32 %v589, %v478
      %v591 = vsel %vm314, %v479, 0.0
      %v592 = vadd.f32 %v590, %v591
      %593 = vadd.xlane.f32.xlu0 %v592
      %v594 = vpop.xlane.xlu0 %593
      %v595 = vadd.f32 %v480, %v481
      %v596 = vadd.f32 %v595, %v482
      %v597 = vadd.f32 %v596, %v483
      %v598 = vadd.f32 %v597, %v484
      %v599 = vadd.f32 %v598, %v485
      %v600 = vsel %vm314, %v486, 0.0
      %v601 = vadd.f32 %v599, %v600
      %602 = vadd.xlane.f32.xlu0 %v601
      %v603 = vpop.xlane.xlu0 %602
      %v604 = vadd.f32 %v487, %v488
      %v605 = vadd.f32 %v604, %v489
      %v606 = vadd.f32 %v605, %v490
      %v607 = vadd.f32 %v606, %v491
      %v608 = vadd.f32 %v607, %v492
      %v609 = vsel %vm314, %v493, 0.0
      %v610 = vadd.f32 %v608, %v609
      %611 = vadd.xlane.f32.xlu0 %v610
      %v612 = vpop.xlane.xlu0 %611
      %v613 = vadd.f32 %v494, %v495
      %v614 = vadd.f32 %v613, %v496
      %v615 = vadd.f32 %v614, %v497
      %v616 = vadd.f32 %v615, %v498
      %v617 = vadd.f32 %v616, %v499
      %v618 = vsel %vm314, %v500, 0.0
      %v619 = vadd.f32 %v617, %v618
      %620 = vadd.xlane.f32.xlu0 %v619
      %v621 = vpop.xlane.xlu0 %620
      %v622 = vadd.f32 %v501, %v502
      %v623 = vadd.f32 %v622, %v503
      %v624 = vadd.f32 %v623, %v504
      %v625 = vadd.f32 %v624, %v505
      %v626 = vadd.f32 %v625, %v506
      %v627 = vsel %vm314, %v507, 0.0
      %v628 = vadd.f32 %v626, %v627
      %629 = vadd.xlane.f32.xlu0 %v628
      %v630 = vpop.xlane.xlu0 %629
      %v631 = vadd.f32 %v508, %v509
      %v632 = vadd.f32 %v631, %v510
      %v633 = vadd.f32 %v632, %v511
      %v634 = vadd.f32 %v633, %v512
      %v635 = vadd.f32 %v634, %v513
      %v636 = vsel %vm314, %v514, 0.0
      %v637 = vadd.f32 %v635, %v636
      %638 = vadd.xlane.f32.xlu0 %v637
      %v639 = vpop.xlane.xlu0 %638
      %v640 = vadd.f32 %v515, %v516
      %v641 = vadd.f32 %v640, %v517
      %v642 = vadd.f32 %v641, %v518
      %v643 = vadd.f32 %v642, %v519
      %v644 = vadd.f32 %v643, %v520
      %v645 = vsel %vm314, %v521, 0.0
      %v646 = vadd.f32 %v644, %v645
      %647 = vadd.xlane.f32.xlu0 %v646
      %v648 = vpop.xlane.xlu0 %647
      %v649 = vadd.f32 %v522, %v523
      %v650 = vadd.f32 %v649, %v524
      %v651 = vadd.f32 %v650, %v525
      %v652 = vadd.f32 %v651, %v526
      %v653 = vadd.f32 %v652, %v527
      %v654 = vsel %vm314, %v528, 0.0
      %v655 = vadd.f32 %v653, %v654
      %656 = vadd.xlane.f32.xlu0 %v655
      %v657 = vpop.xlane.xlu0 %656
      %v658 = vadd.f32 %v529, %v530
      %v659 = vadd.f32 %v658, %v531
      %v660 = vadd.f32 %v659, %v532
      %v661 = vadd.f32 %v660, %v533
      %v662 = vadd.f32 %v661, %v534
      %v663 = vsel %vm314, %v535, 0.0
      %v664 = vadd.f32 %v662, %v663
      %665 = vadd.xlane.f32.xlu0 %v664
      %v666 = vpop.xlane.xlu0 %665
      %v667 = vadd.f32 %v536, %v537
      %v668 = vadd.f32 %v667, %v538
      %v669 = vadd.f32 %v668, %v539
      %v670 = vadd.f32 %v669, %v540
      %v671 = vadd.f32 %v670, %v541
      %v672 = vsel %vm314, %v542, 0.0
      %v673 = vadd.f32 %v671, %v672
      %674 = vadd.xlane.f32.xlu0 %v673
      %v675 = vpop.xlane.xlu0 %674
      %v676 = vadd.f32 %v543, %v544
      %v677 = vadd.f32 %v676, %v545
      %v678 = vadd.f32 %v677, %v546
      %v679 = vadd.f32 %v678, %v547
      %v680 = vadd.f32 %v679, %v548
      %v681 = vsel %vm314, %v549, 0.0
      %v682 = vadd.f32 %v680, %v681
      %683 = vadd.xlane.f32.xlu0 %v682
      %v684 = vpop.xlane.xlu0 %683
      %v685 = vmul.f32 %v318, 0.0012755102
      %v686 = vmul.f32 %v327, 0.0012755102
      %v687 = vmul.f32 %v336, 0.0012755102
      %v688 = vmul.f32 %v345, 0.0012755102
      %v689 = vmul.f32 %v354, 0.0012755102
      %v690 = vmul.f32 %v363, 0.0012755102
      %v691 = vmul.f32 %v372, 0.0012755102
      %v692 = vmul.f32 %v381, 0.0012755102
      %v693 = vmul.f32 %v390, 0.0012755102
      %v694 = vmul.f32 %v399, 0.0012755102
      %v695 = vmul.f32 %v408, 0.0012755102
      %v696 = vmul.f32 %v417, 0.0012755102
      %v697 = vmul.f32 %v426, 0.0012755102
      %v698 = vmul.f32 %v435, 0.0012755102
      %v699 = vmul.f32 %v444, 0.0012755102
      %v700 = vmul.f32 %v558, 0.0012755102
      %v701 = vmul.f32 %v567, 0.0012755102
      %v702 = vmul.f32 %v576, 0.0012755102
      %v703 = vmul.f32 %v585, 0.0012755102
      %v704 = vmul.f32 %v594, 0.0012755102
      %v705 = vmul.f32 %v603, 0.0012755102
      %v706 = vmul.f32 %v612, 0.0012755102
      %v707 = vmul.f32 %v621, 0.0012755102
      %v708 = vmul.f32 %v630, 0.0012755102
      %v709 = vmul.f32 %v639, 0.0012755102
      %v710 = vmul.f32 %v648, 0.0012755102
      %v711 = vmul.f32 %v657, 0.0012755102
      %v712 = vmul.f32 %v666, 0.0012755102
      %v713 = vmul.f32 %v675, 0.0012755102
      %v714 = vmul.f32 %v684, 0.0012755102
      %v715 = vmul.f32 %v685, %v685
      %v716 = vmul.f32 %v686, %v686
      %v717 = vmul.f32 %v687, %v687
      %v718 = vmul.f32 %v688, %v688
      %v719 = vmul.f32 %v689, %v689
      %v720 = vmul.f32 %v690, %v690
      %v721 = vmul.f32 %v691, %v691
      %v722 = vmul.f32 %v692, %v692
      %v723 = vmul.f32 %v693, %v693
      %v724 = vmul.f32 %v694, %v694
      %v725 = vmul.f32 %v695, %v695
      %v726 = vmul.f32 %v696, %v696
      %v727 = vmul.f32 %v697, %v697
      %v728 = vmul.f32 %v698, %v698
      %v729 = vmul.f32 %v699, %v699
      %v730 = vsub.f32 %v700, %v715
      %v731 = vsub.f32 %v701, %v716
      %v732 = vsub.f32 %v702, %v717
      %v733 = vsub.f32 %v703, %v718
      %v734 = vsub.f32 %v704, %v719
      %v735 = vsub.f32 %v705, %v720
      %v736 = vsub.f32 %v706, %v721
      %v737 = vsub.f32 %v707, %v722
      %v738 = vsub.f32 %v708, %v723
      %v739 = vsub.f32 %v709, %v724
      %v740 = vsub.f32 %v710, %v725
      %v741 = vsub.f32 %v711, %v726
      %v742 = vsub.f32 %v712, %v727
      %v743 = vsub.f32 %v713, %v728
      %v744 = vsub.f32 %v714, %v729
      %v745 = vadd.f32 %v730, 1e-05
      %v746 = vadd.f32 %v731, 1e-05
      %v747 = vadd.f32 %v732, 1e-05
      %v748 = vadd.f32 %v733, 1e-05
      %v749 = vadd.f32 %v734, 1e-05
      %v750 = vadd.f32 %v735, 1e-05
      %v751 = vadd.f32 %v736, 1e-05
      %v752 = vadd.f32 %v737, 1e-05
      %v753 = vadd.f32 %v738, 1e-05
      %v754 = vadd.f32 %v739, 1e-05
      %v755 = vadd.f32 %v740, 1e-05
      %v756 = vadd.f32 %v741, 1e-05
      %v757 = vadd.f32 %v742, 1e-05
      %v758 = vadd.f32 %v743, 1e-05
      %v759 = vadd.f32 %v744, 1e-05
      %v760 = vrsqrt.pop %v745
      %v761 = vrsqrt.pop %v746
      %v762 = vrsqrt.pop %v747
      %v763 = vrsqrt.pop %v748
      %v764 = vrsqrt.pop %v749
      %v765 = vrsqrt.pop %v750
      %v766 = vrsqrt.pop %v751
      %v767 = vrsqrt.pop %v752
      %v768 = vrsqrt.pop %v753
      %v769 = vrsqrt.pop %v754
      %v770 = vrsqrt.pop %v755
      %v771 = vrsqrt.pop %v756
      %v772 = vrsqrt.pop %v757
      %v773 = vrsqrt.pop %v758
      %v774 = vrsqrt.pop %v759
      %s775 = smul.u32 %s14, 120
      %s776 = scalar_lea.vmem %s2, %s775
      %v777 = vld [vmem:[%s776] sm:$0xff]
      %v778 = vld [vmem:[%s776 + $0x8] sm:$0xff]
      %v779 = vld [vmem:[%s776 + $0x10] sm:$0xff]
      %v780 = vld [vmem:[%s776 + $0x18] sm:$0xff]
      %v781 = vld [vmem:[%s776 + $0x20] sm:$0xff]
      %v782 = vld [vmem:[%s776 + $0x28] sm:$0xff]
      %v783 = vld [vmem:[%s776 + $0x30] sm:$0xff]
      %v784 = vld [vmem:[%s776 + $0x38] sm:$0xff]
      %v785 = vld [vmem:[%s776 + $0x40] sm:$0xff]
      %v786 = vld [vmem:[%s776 + $0x48] sm:$0xff]
      %v787 = vld [vmem:[%s776 + $0x50] sm:$0xff]
      %v788 = vld [vmem:[%s776 + $0x58] sm:$0xff]
      %v789 = vld [vmem:[%s776 + $0x60] sm:$0xff]
      %v790 = vld [vmem:[%s776 + $0x68] sm:$0xff]
      %v791 = vld [vmem:[%s776 + $0x70] sm:$0xff]
      %v792 = vmul.f32 %v777, %v760
      %v793 = vmul.f32 %v778, %v761
      %v794 = vmul.f32 %v779, %v762
      %v795 = vmul.f32 %v780, %v763
      %v796 = vmul.f32 %v781, %v764
      %v797 = vmul.f32 %v782, %v765
      %v798 = vmul.f32 %v783, %v766
      %v799 = vmul.f32 %v784, %v767
      %v800 = vmul.f32 %v785, %v768
      %v801 = vmul.f32 %v786, %v769
      %v802 = vmul.f32 %v787, %v770
      %v803 = vmul.f32 %v788, %v771
      %v804 = vmul.f32 %v789, %v772
      %v805 = vmul.f32 %v790, %v773
      %v806 = vmul.f32 %v791, %v774
      %v807 = vmul.f32 %v685, %v792
      %v808 = vmul.f32 %v686, %v793
      %v809 = vmul.f32 %v687, %v794
      %v810 = vmul.f32 %v688, %v795
      %v811 = vmul.f32 %v689, %v796
      %v812 = vmul.f32 %v690, %v797
      %v813 = vmul.f32 %v691, %v798
      %v814 = vmul.f32 %v692, %v799
      %v815 = vmul.f32 %v693, %v800
      %v816 = vmul.f32 %v694, %v801
      %v817 = vmul.f32 %v695, %v802
      %v818 = vmul.f32 %v696, %v803
      %v819 = vmul.f32 %v697, %v804
      %v820 = vmul.f32 %v698, %v805
      %v821 = vmul.f32 %v699, %v806
      %837 = vrot.lane.b32.xlu0 %v807, 1
      %v838 = vpop.permute.xlu0 %837
      %839 = vrot.lane.b32.xlu0 %v808, 1
      %v840 = vpop.permute.xlu0 %839
      %841 = vrot.lane.b32.xlu0 %v809, 1
      %v842 = vpop.permute.xlu0 %841
      %843 = vrot.lane.b32.xlu0 %v810, 1
      %v844 = vpop.permute.xlu0 %843
      %845 = vrot.lane.b32.xlu0 %v811, 1
      %v846 = vpop.permute.xlu0 %845
      %847 = vrot.lane.b32.xlu0 %v812, 1
      %v848 = vpop.permute.xlu0 %847
      %849 = vrot.lane.b32.xlu0 %v813, 1
      %v850 = vpop.permute.xlu0 %849
      %851 = vrot.lane.b32.xlu0 %v814, 1
      %v852 = vpop.permute.xlu0 %851
      %853 = vrot.lane.b32.xlu0 %v815, 1
      %v854 = vpop.permute.xlu0 %853
      %855 = vrot.lane.b32.xlu0 %v816, 1
      %v856 = vpop.permute.xlu0 %855
      %857 = vrot.lane.b32.xlu0 %v817, 1
      %v858 = vpop.permute.xlu0 %857
      %859 = vrot.lane.b32.xlu0 %v818, 1
      %v860 = vpop.permute.xlu0 %859
      %861 = vrot.lane.b32.xlu0 %v819, 1
      %v862 = vpop.permute.xlu0 %861
      %863 = vrot.lane.b32.xlu0 %v820, 1
      %v864 = vpop.permute.xlu0 %863
      %865 = vrot.lane.b32.xlu0 %v821, 1
      %v866 = vpop.permute.xlu0 %865
      %v882 = vsub.f32 %v777, %v838
      %v883 = vsub.f32 %v778, %v840
      %v884 = vsub.f32 %v779, %v842
      %v885 = vsub.f32 %v780, %v844
      %v886 = vsub.f32 %v781, %v846
      %v887 = vsub.f32 %v782, %v848
      %v888 = vsub.f32 %v783, %v850
      %v889 = vsub.f32 %v784, %v852
      %v890 = vsub.f32 %v785, %v854
      %v891 = vsub.f32 %v786, %v856
      %v892 = vsub.f32 %v787, %v858
      %v893 = vsub.f32 %v788, %v860
      %v894 = vsub.f32 %v789, %v862
      %v895 = vsub.f32 %v790, %v864
      %v896 = vsub.f32 %v791, %v866
      %898 = vset.pattern.permute.xlu0 0
      %899 = vperm.xlu0 %898, %v792
      %v900 = vpop.permute.xlu0 %899
      %903 = vset.pattern.permute.xlu0 0
      %904 = vperm.xlu0 %903, %v793
      %v905 = vpop.permute.xlu0 %904
      %908 = vset.pattern.permute.xlu0 0
      %909 = vperm.xlu0 %908, %v794
      %v910 = vpop.permute.xlu0 %909
      %913 = vset.pattern.permute.xlu0 0
      %914 = vperm.xlu0 %913, %v795
      %v915 = vpop.permute.xlu0 %914
      %918 = vset.pattern.permute.xlu0 0
      %919 = vperm.xlu0 %918, %v796
      %v920 = vpop.permute.xlu0 %919
      %923 = vset.pattern.permute.xlu0 0
      %924 = vperm.xlu0 %923, %v797
      %v925 = vpop.permute.xlu0 %924
      %928 = vset.pattern.permute.xlu0 0
      %929 = vperm.xlu0 %928, %v798
      %v930 = vpop.permute.xlu0 %929
      %933 = vset.pattern.permute.xlu0 0
      %934 = vperm.xlu0 %933, %v799
      %v935 = vpop.permute.xlu0 %934
      %938 = vset.pattern.permute.xlu0 0
      %939 = vperm.xlu0 %938, %v800
      %v940 = vpop.permute.xlu0 %939
      %943 = vset.pattern.permute.xlu0 0
      %944 = vperm.xlu0 %943, %v801
      %v945 = vpop.permute.xlu0 %944
      %948 = vset.pattern.permute.xlu0 0
      %949 = vperm.xlu0 %948, %v802
      %v950 = vpop.permute.xlu0 %949
      %953 = vset.pattern.permute.xlu0 0
      %954 = vperm.xlu0 %953, %v803
      %v955 = vpop.permute.xlu0 %954
      %958 = vset.pattern.permute.xlu0 0
      %959 = vperm.xlu0 %958, %v804
      %v960 = vpop.permute.xlu0 %959
      %963 = vset.pattern.permute.xlu0 0
      %964 = vperm.xlu0 %963, %v805
      %v965 = vpop.permute.xlu0 %964
      %968 = vset.pattern.permute.xlu0 0
      %969 = vperm.xlu0 %968, %v806
      %v970 = vpop.permute.xlu0 %969
      %v972 = vmul.f32 %v204, %v900
      %v973 = vmul.f32 %v205, %v900
      %v974 = vmul.f32 %v206, %v900
      %v975 = vmul.f32 %v207, %v900
      %v976 = vmul.f32 %v208, %v900
      %v977 = vmul.f32 %v209, %v900
      %v978 = vmul.f32 %v210, %v900
      %v979 = vmul.f32 %v211, %v905
      %v980 = vmul.f32 %v212, %v905
      %v981 = vmul.f32 %v213, %v905
      %v982 = vmul.f32 %v214, %v905
      %v983 = vmul.f32 %v215, %v905
      %v984 = vmul.f32 %v216, %v905
      %v985 = vmul.f32 %v217, %v905
      %v986 = vmul.f32 %v218, %v910
      %v987 = vmul.f32 %v219, %v910
      %v988 = vmul.f32 %v220, %v910
      %v989 = vmul.f32 %v221, %v910
      %v990 = vmul.f32 %v222, %v910
      %v991 = vmul.f32 %v223, %v910
      %v992 = vmul.f32 %v224, %v910
      %v993 = vmul.f32 %v225, %v915
      %v994 = vmul.f32 %v226, %v915
      %v995 = vmul.f32 %v227, %v915
      %v996 = vmul.f32 %v228, %v915
      %v997 = vmul.f32 %v229, %v915
      %v998 = vmul.f32 %v230, %v915
      %v999 = vmul.f32 %v231, %v915
      %v1000 = vmul.f32 %v232, %v920
      %v1001 = vmul.f32 %v233, %v920
      %v1002 = vmul.f32 %v234, %v920
      %v1003 = vmul.f32 %v235, %v920
      %v1004 = vmul.f32 %v236, %v920
      %v1005 = vmul.f32 %v237, %v920
      %v1006 = vmul.f32 %v238, %v920
      %v1007 = vmul.f32 %v239, %v925
      %v1008 = vmul.f32 %v240, %v925
      %v1009 = vmul.f32 %v241, %v925
      %v1010 = vmul.f32 %v242, %v925
      %v1011 = vmul.f32 %v243, %v925
      %v1012 = vmul.f32 %v244, %v925
      %v1013 = vmul.f32 %v245, %v925
      %v1014 = vmul.f32 %v246, %v930
      %v1015 = vmul.f32 %v247, %v930
      %v1016 = vmul.f32 %v248, %v930
      %v1017 = vmul.f32 %v249, %v930
      %v1018 = vmul.f32 %v250, %v930
      %v1019 = vmul.f32 %v251, %v930
      %v1020 = vmul.f32 %v252, %v930
      %v1021 = vmul.f32 %v253, %v935
      %v1022 = vmul.f32 %v254, %v935
      %v1023 = vmul.f32 %v255, %v935
      %v1024 = vmul.f32 %v256, %v935
      %v1025 = vmul.f32 %v257, %v935
      %v1026 = vmul.f32 %v258, %v935
      %v1027 = vmul.f32 %v259, %v935
      %v1028 = vmul.f32 %v260, %v940
      %v1029 = vmul.f32 %v261, %v940
      %v1030 = vmul.f32 %v262, %v940
      %v1031 = vmul.f32 %v263, %v940
      %v1032 = vmul.f32 %v264, %v940
      %v1033 = vmul.f32 %v265, %v940
      %v1034 = vmul.f32 %v266, %v940
      %v1035 = vmul.f32 %v267, %v945
      %v1036 = vmul.f32 %v268, %v945
      %v1037 = vmul.f32 %v269, %v945
      %v1038 = vmul.f32 %v270, %v945
      %v1039 = vmul.f32 %v271, %v945
      %v1040 = vmul.f32 %v272, %v945
      %v1041 = vmul.f32 %v273, %v945
      %v1042 = vmul.f32 %v274, %v950
      %v1043 = vmul.f32 %v275, %v950
      %v1044 = vmul.f32 %v276, %v950
      %v1045 = vmul.f32 %v277, %v950
      %v1046 = vmul.f32 %v278, %v950
      %v1047 = vmul.f32 %v279, %v950
      %v1048 = vmul.f32 %v280, %v950
      %v1049 = vmul.f32 %v281, %v955
      %v1050 = vmul.f32 %v282, %v955
      %v1051 = vmul.f32 %v283, %v955
      %v1052 = vmul.f32 %v284, %v955
      %v1053 = vmul.f32 %v285, %v955
      %v1054 = vmul.f32 %v286, %v955
      %v1055 = vmul.f32 %v287, %v955
      %v1056 = vmul.f32 %v288, %v960
      %v1057 = vmul.f32 %v289, %v960
      %v1058 = vmul.f32 %v290, %v960
      %v1059 = vmul.f32 %v291, %v960
      %v1060 = vmul.f32 %v292, %v960
      %v1061 = vmul.f32 %v293, %v960
      %v1062 = vmul.f32 %v294, %v960
      %v1063 = vmul.f32 %v295, %v965
      %v1064 = vmul.f32 %v296, %v965
      %v1065 = vmul.f32 %v297, %v965
      %v1066 = vmul.f32 %v298, %v965
      %v1067 = vmul.f32 %v299, %v965
      %v1068 = vmul.f32 %v300, %v965
      %v1069 = vmul.f32 %v301, %v965
      %v1070 = vmul.f32 %v302, %v970
      %v1071 = vmul.f32 %v303, %v970
      %v1072 = vmul.f32 %v304, %v970
      %v1073 = vmul.f32 %v305, %v970
      %v1074 = vmul.f32 %v306, %v970
      %v1075 = vmul.f32 %v307, %v970
      %v1076 = vmul.f32 %v308, %v970
      %1078 = vset.pattern.permute.xlu0 1
      %1079 = vperm.xlu0 %1078, %v882
      %v1080 = vpop.permute.xlu0 %1079
      %1083 = vset.pattern.permute.xlu0 1
      %1084 = vperm.xlu0 %1083, %v883
      %v1085 = vpop.permute.xlu0 %1084
      %1088 = vset.pattern.permute.xlu0 1
      %1089 = vperm.xlu0 %1088, %v884
      %v1090 = vpop.permute.xlu0 %1089
      %1093 = vset.pattern.permute.xlu0 1
      %1094 = vperm.xlu0 %1093, %v885
      %v1095 = vpop.permute.xlu0 %1094
      %1098 = vset.pattern.permute.xlu0 1
      %1099 = vperm.xlu0 %1098, %v886
      %v1100 = vpop.permute.xlu0 %1099
      %1103 = vset.pattern.permute.xlu0 1
      %1104 = vperm.xlu0 %1103, %v887
      %v1105 = vpop.permute.xlu0 %1104
      %1108 = vset.pattern.permute.xlu0 1
      %1109 = vperm.xlu0 %1108, %v888
      %v1110 = vpop.permute.xlu0 %1109
      %1113 = vset.pattern.permute.xlu0 1
      %1114 = vperm.xlu0 %1113, %v889
      %v1115 = vpop.permute.xlu0 %1114
      %1118 = vset.pattern.permute.xlu0 1
      %1119 = vperm.xlu0 %1118, %v890
      %v1120 = vpop.permute.xlu0 %1119
      %1123 = vset.pattern.permute.xlu0 1
      %1124 = vperm.xlu0 %1123, %v891
      %v1125 = vpop.permute.xlu0 %1124
      %1128 = vset.pattern.permute.xlu0 1
      %1129 = vperm.xlu0 %1128, %v892
      %v1130 = vpop.permute.xlu0 %1129
      %1133 = vset.pattern.permute.xlu0 1
      %1134 = vperm.xlu0 %1133, %v893
      %v1135 = vpop.permute.xlu0 %1134
      %1138 = vset.pattern.permute.xlu0 1
      %1139 = vperm.xlu0 %1138, %v894
      %v1140 = vpop.permute.xlu0 %1139
      %1143 = vset.pattern.permute.xlu0 1
      %1144 = vperm.xlu0 %1143, %v895
      %v1145 = vpop.permute.xlu0 %1144
      %1148 = vset.pattern.permute.xlu0 1
      %1149 = vperm.xlu0 %1148, %v896
      %v1150 = vpop.permute.xlu0 %1149
      %v1152 = vadd.f32 %v972, %v1080
      %v1153 = vadd.f32 %v973, %v1080
      %v1154 = vadd.f32 %v974, %v1080
      %v1155 = vadd.f32 %v975, %v1080
      %v1156 = vadd.f32 %v976, %v1080
      %v1157 = vadd.f32 %v977, %v1080
      %v1158 = vadd.f32 %v978, %v1080
      %v1159 = vadd.f32 %v979, %v1085
      %v1160 = vadd.f32 %v980, %v1085
      %v1161 = vadd.f32 %v981, %v1085
      %v1162 = vadd.f32 %v982, %v1085
      %v1163 = vadd.f32 %v983, %v1085
      %v1164 = vadd.f32 %v984, %v1085
      %v1165 = vadd.f32 %v985, %v1085
      %v1166 = vadd.f32 %v986, %v1090
      %v1167 = vadd.f32 %v987, %v1090
      %v1168 = vadd.f32 %v988, %v1090
      %v1169 = vadd.f32 %v989, %v1090
      %v1170 = vadd.f32 %v990, %v1090
      %v1171 = vadd.f32 %v991, %v1090
      %v1172 = vadd.f32 %v992, %v1090
      %v1173 = vadd.f32 %v993, %v1095
      %v1174 = vadd.f32 %v994, %v1095
      %v1175 = vadd.f32 %v995, %v1095
      %v1176 = vadd.f32 %v996, %v1095
      %v1177 = vadd.f32 %v997, %v1095
      %v1178 = vadd.f32 %v998, %v1095
      %v1179 = vadd.f32 %v999, %v1095
      %v1180 = vadd.f32 %v1000, %v1100
      %v1181 = vadd.f32 %v1001, %v1100
      %v1182 = vadd.f32 %v1002, %v1100
      %v1183 = vadd.f32 %v1003, %v1100
      %v1184 = vadd.f32 %v1004, %v1100
      %v1185 = vadd.f32 %v1005, %v1100
      %v1186 = vadd.f32 %v1006, %v1100
      %v1187 = vadd.f32 %v1007, %v1105
      %v1188 = vadd.f32 %v1008, %v1105
      %v1189 = vadd.f32 %v1009, %v1105
      %v1190 = vadd.f32 %v1010, %v1105
      %v1191 = vadd.f32 %v1011, %v1105
      %v1192 = vadd.f32 %v1012, %v1105
      %v1193 = vadd.f32 %v1013, %v1105
      %v1194 = vadd.f32 %v1014, %v1110
      %v1195 = vadd.f32 %v1015, %v1110
      %v1196 = vadd.f32 %v1016, %v1110
      %v1197 = vadd.f32 %v1017, %v1110
      %v1198 = vadd.f32 %v1018, %v1110
      %v1199 = vadd.f32 %v1019, %v1110
      %v1200 = vadd.f32 %v1020, %v1110
      %v1201 = vadd.f32 %v1021, %v1115
      %v1202 = vadd.f32 %v1022, %v1115
      %v1203 = vadd.f32 %v1023, %v1115
      %v1204 = vadd.f32 %v1024, %v1115
      %v1205 = vadd.f32 %v1025, %v1115
      %v1206 = vadd.f32 %v1026, %v1115
      %v1207 = vadd.f32 %v1027, %v1115
      %v1208 = vadd.f32 %v1028, %v1120
      %v1209 = vadd.f32 %v1029, %v1120
      %v1210 = vadd.f32 %v1030, %v1120
      %v1211 = vadd.f32 %v1031, %v1120
      %v1212 = vadd.f32 %v1032, %v1120
      %v1213 = vadd.f32 %v1033, %v1120
      %v1214 = vadd.f32 %v1034, %v1120
      %v1215 = vadd.f32 %v1035, %v1125
      %v1216 = vadd.f32 %v1036, %v1125
      %v1217 = vadd.f32 %v1037, %v1125
      %v1218 = vadd.f32 %v1038, %v1125
      %v1219 = vadd.f32 %v1039, %v1125
      %v1220 = vadd.f32 %v1040, %v1125
      %v1221 = vadd.f32 %v1041, %v1125
      %v1222 = vadd.f32 %v1042, %v1130
      %v1223 = vadd.f32 %v1043, %v1130
      %v1224 = vadd.f32 %v1044, %v1130
      %v1225 = vadd.f32 %v1045, %v1130
      %v1226 = vadd.f32 %v1046, %v1130
      %v1227 = vadd.f32 %v1047, %v1130
      %v1228 = vadd.f32 %v1048, %v1130
      %v1229 = vadd.f32 %v1049, %v1135
      %v1230 = vadd.f32 %v1050, %v1135
      %v1231 = vadd.f32 %v1051, %v1135
      %v1232 = vadd.f32 %v1052, %v1135
      %v1233 = vadd.f32 %v1053, %v1135
      %v1234 = vadd.f32 %v1054, %v1135
      %v1235 = vadd.f32 %v1055, %v1135
      %v1236 = vadd.f32 %v1056, %v1140
      %v1237 = vadd.f32 %v1057, %v1140
      %v1238 = vadd.f32 %v1058, %v1140
      %v1239 = vadd.f32 %v1059, %v1140
      %v1240 = vadd.f32 %v1060, %v1140
      %v1241 = vadd.f32 %v1061, %v1140
      %v1242 = vadd.f32 %v1062, %v1140
      %v1243 = vadd.f32 %v1063, %v1145
      %v1244 = vadd.f32 %v1064, %v1145
      %v1245 = vadd.f32 %v1065, %v1145
      %v1246 = vadd.f32 %v1066, %v1145
      %v1247 = vadd.f32 %v1067, %v1145
      %v1248 = vadd.f32 %v1068, %v1145
      %v1249 = vadd.f32 %v1069, %v1145
      %v1250 = vadd.f32 %v1070, %v1150
      %v1251 = vadd.f32 %v1071, %v1150
      %v1252 = vadd.f32 %v1072, %v1150
      %v1253 = vadd.f32 %v1073, %v1150
      %v1254 = vadd.f32 %v1074, %v1150
      %v1255 = vadd.f32 %v1075, %v1150
      %v1256 = vadd.f32 %v1076, %v1150
      %v1257 = vld [vmem:[%s195] sm:$0xff]
      %v1258 = vld [vmem:[%s195 + $0x8] sm:$0xff]
      %v1259 = vld [vmem:[%s195 + $0x10] sm:$0xff]
      %v1260 = vld [vmem:[%s195 + $0x18] sm:$0xff]
      %v1261 = vld [vmem:[%s195 + $0x20] sm:$0xff]
      %v1262 = vld [vmem:[%s195 + $0x28] sm:$0xff]
      %v1263 = vld [vmem:[%s195 + $0x30] sm:$0xff]
      %v1264 = vld [vmem:[%s195 + $0x38] sm:$0xff]
      %v1265 = vld [vmem:[%s195 + $0x40] sm:$0xff]
      %v1266 = vld [vmem:[%s195 + $0x48] sm:$0xff]
      %v1267 = vld [vmem:[%s195 + $0x50] sm:$0xff]
      %v1268 = vld [vmem:[%s195 + $0x58] sm:$0xff]
      %v1269 = vld [vmem:[%s195 + $0x60] sm:$0xff]
      %v1270 = vld [vmem:[%s195 + $0x68] sm:$0xff]
      %v1271 = vld [vmem:[%s195 + $0x70] sm:$0xff]
      %v1272 = vld [vmem:[%s195 + $0x78] sm:$0xff]
      %v1273 = vld [vmem:[%s195 + $0x80] sm:$0xff]
      %v1274 = vld [vmem:[%s195 + $0x88] sm:$0xff]
      %v1275 = vld [vmem:[%s195 + $0x90] sm:$0xff]
      %v1276 = vld [vmem:[%s195 + $0x98] sm:$0xff]
      %v1277 = vld [vmem:[%s195 + $0xa0] sm:$0xff]
      %v1278 = vld [vmem:[%s195 + $0xa8] sm:$0xff]
      %v1279 = vld [vmem:[%s195 + $0xb0] sm:$0xff]
      %v1280 = vld [vmem:[%s195 + $0xb8] sm:$0xff]
      %v1281 = vld [vmem:[%s195 + $0xc0] sm:$0xff]
      %v1282 = vld [vmem:[%s195 + $0xc8] sm:$0xff]
      %v1283 = vld [vmem:[%s195 + $0xd0] sm:$0xff]
      %v1284 = vld [vmem:[%s195 + $0xd8] sm:$0xff]
      %v1285 = vld [vmem:[%s195 + $0xe0] sm:$0xff]
      %v1286 = vld [vmem:[%s195 + $0xe8] sm:$0xff]
      %v1287 = vld [vmem:[%s195 + $0xf0] sm:$0xff]
      %v1288 = vld [vmem:[%s195 + $0xf8] sm:$0xff]
      %v1289 = vld [vmem:[%s195 + $0x100] sm:$0xff]
      %v1290 = vld [vmem:[%s195 + $0x108] sm:$0xff]
      %v1291 = vld [vmem:[%s195 + $0x110] sm:$0xff]
      %v1292 = vld [vmem:[%s195 + $0x118] sm:$0xff]
      %v1293 = vld [vmem:[%s195 + $0x120] sm:$0xff]
      %v1294 = vld [vmem:[%s195 + $0x128] sm:$0xff]
      %v1295 = vld [vmem:[%s195 + $0x130] sm:$0xff]
      %v1296 = vld [vmem:[%s195 + $0x138] sm:$0xff]
      %v1297 = vld [vmem:[%s195 + $0x140] sm:$0xff]
      %v1298 = vld [vmem:[%s195 + $0x148] sm:$0xff]
      %v1299 = vld [vmem:[%s195 + $0x150] sm:$0xff]
      %v1300 = vld [vmem:[%s195 + $0x158] sm:$0xff]
      %v1301 = vld [vmem:[%s195 + $0x160] sm:$0xff]
      %v1302 = vld [vmem:[%s195 + $0x168] sm:$0xff]
      %v1303 = vld [vmem:[%s195 + $0x170] sm:$0xff]
      %v1304 = vld [vmem:[%s195 + $0x178] sm:$0xff]
      %v1305 = vld [vmem:[%s195 + $0x180] sm:$0xff]
      %v1306 = vld [vmem:[%s195 + $0x188] sm:$0xff]
      %v1307 = vld [vmem:[%s195 + $0x190] sm:$0xff]
      %v1308 = vld [vmem:[%s195 + $0x198] sm:$0xff]
      %v1309 = vld [vmem:[%s195 + $0x1a0] sm:$0xff]
      %v1310 = vld [vmem:[%s195 + $0x1a8] sm:$0xff]
      %v1311 = vld [vmem:[%s195 + $0x1b0] sm:$0xff]
      %v1312 = vld [vmem:[%s195 + $0x1b8] sm:$0xff]
      %v1313 = vld [vmem:[%s195 + $0x1c0] sm:$0xff]
      %v1314 = vld [vmem:[%s195 + $0x1c8] sm:$0xff]
      %v1315 = vld [vmem:[%s195 + $0x1d0] sm:$0xff]
      %v1316 = vld [vmem:[%s195 + $0x1d8] sm:$0xff]
      %v1317 = vld [vmem:[%s195 + $0x1e0] sm:$0xff]
      %v1318 = vld [vmem:[%s195 + $0x1e8] sm:$0xff]
      %v1319 = vld [vmem:[%s195 + $0x1f0] sm:$0xff]
      %v1320 = vld [vmem:[%s195 + $0x1f8] sm:$0xff]
      %v1321 = vld [vmem:[%s195 + $0x200] sm:$0xff]
      %v1322 = vld [vmem:[%s195 + $0x208] sm:$0xff]
      %v1323 = vld [vmem:[%s195 + $0x210] sm:$0xff]
      %v1324 = vld [vmem:[%s195 + $0x218] sm:$0xff]
      %v1325 = vld [vmem:[%s195 + $0x220] sm:$0xff]
      %v1326 = vld [vmem:[%s195 + $0x228] sm:$0xff]
      %v1327 = vld [vmem:[%s195 + $0x230] sm:$0xff]
      %v1328 = vld [vmem:[%s195 + $0x238] sm:$0xff]
      %v1329 = vld [vmem:[%s195 + $0x240] sm:$0xff]
      %v1330 = vld [vmem:[%s195 + $0x248] sm:$0xff]
      %v1331 = vld [vmem:[%s195 + $0x250] sm:$0xff]
      %v1332 = vld [vmem:[%s195 + $0x258] sm:$0xff]
      %v1333 = vld [vmem:[%s195 + $0x260] sm:$0xff]
      %v1334 = vld [vmem:[%s195 + $0x268] sm:$0xff]
      %v1335 = vld [vmem:[%s195 + $0x270] sm:$0xff]
      %v1336 = vld [vmem:[%s195 + $0x278] sm:$0xff]
      %v1337 = vld [vmem:[%s195 + $0x280] sm:$0xff]
      %v1338 = vld [vmem:[%s195 + $0x288] sm:$0xff]
      %v1339 = vld [vmem:[%s195 + $0x290] sm:$0xff]
      %v1340 = vld [vmem:[%s195 + $0x298] sm:$0xff]
      %v1341 = vld [vmem:[%s195 + $0x2a0] sm:$0xff]
      %v1342 = vld [vmem:[%s195 + $0x2a8] sm:$0xff]
      %v1343 = vld [vmem:[%s195 + $0x2b0] sm:$0xff]
      %v1344 = vld [vmem:[%s195 + $0x2b8] sm:$0xff]
      %v1345 = vld [vmem:[%s195 + $0x2c0] sm:$0xff]
      %v1346 = vld [vmem:[%s195 + $0x2c8] sm:$0xff]
      %v1347 = vld [vmem:[%s195 + $0x2d0] sm:$0xff]
      %v1348 = vld [vmem:[%s195 + $0x2d8] sm:$0xff]
      %v1349 = vld [vmem:[%s195 + $0x2e0] sm:$0xff]
      %v1350 = vld [vmem:[%s195 + $0x2e8] sm:$0xff]
      %v1351 = vld [vmem:[%s195 + $0x2f0] sm:$0xff]
      %v1352 = vld [vmem:[%s195 + $0x2f8] sm:$0xff]
      %v1353 = vld [vmem:[%s195 + $0x300] sm:$0xff]
      %v1354 = vld [vmem:[%s195 + $0x308] sm:$0xff]
      %v1355 = vld [vmem:[%s195 + $0x310] sm:$0xff]
      %v1356 = vld [vmem:[%s195 + $0x318] sm:$0xff]
      %v1357 = vld [vmem:[%s195 + $0x320] sm:$0xff]
      %v1358 = vld [vmem:[%s195 + $0x328] sm:$0xff]
      %v1359 = vld [vmem:[%s195 + $0x330] sm:$0xff]
      %v1360 = vld [vmem:[%s195 + $0x338] sm:$0xff]
      %v1361 = vld [vmem:[%s195 + $0x340] sm:$0xff]
      %v1362 = vadd.f32 %v1152, %v1257
      %v1363 = vadd.f32 %v1153, %v1258
      %v1364 = vadd.f32 %v1154, %v1259
      %v1365 = vadd.f32 %v1155, %v1260
      %v1366 = vadd.f32 %v1156, %v1261
      %v1367 = vadd.f32 %v1157, %v1262
      %v1368 = vadd.f32 %v1158, %v1263
      %v1369 = vadd.f32 %v1159, %v1264
      %v1370 = vadd.f32 %v1160, %v1265
      %v1371 = vadd.f32 %v1161, %v1266
      %v1372 = vadd.f32 %v1162, %v1267
      %v1373 = vadd.f32 %v1163, %v1268
      %v1374 = vadd.f32 %v1164, %v1269
      %v1375 = vadd.f32 %v1165, %v1270
      %v1376 = vadd.f32 %v1166, %v1271
      %v1377 = vadd.f32 %v1167, %v1272
      %v1378 = vadd.f32 %v1168, %v1273
      %v1379 = vadd.f32 %v1169, %v1274
      %v1380 = vadd.f32 %v1170, %v1275
      %v1381 = vadd.f32 %v1171, %v1276
      %v1382 = vadd.f32 %v1172, %v1277
      %v1383 = vadd.f32 %v1173, %v1278
      %v1384 = vadd.f32 %v1174, %v1279
      %v1385 = vadd.f32 %v1175, %v1280
      %v1386 = vadd.f32 %v1176, %v1281
      %v1387 = vadd.f32 %v1177, %v1282
      %v1388 = vadd.f32 %v1178, %v1283
      %v1389 = vadd.f32 %v1179, %v1284
      %v1390 = vadd.f32 %v1180, %v1285
      %v1391 = vadd.f32 %v1181, %v1286
      %v1392 = vadd.f32 %v1182, %v1287
      %v1393 = vadd.f32 %v1183, %v1288
      %v1394 = vadd.f32 %v1184, %v1289
      %v1395 = vadd.f32 %v1185, %v1290
      %v1396 = vadd.f32 %v1186, %v1291
      %v1397 = vadd.f32 %v1187, %v1292
      %v1398 = vadd.f32 %v1188, %v1293
      %v1399 = vadd.f32 %v1189, %v1294
      %v1400 = vadd.f32 %v1190, %v1295
      %v1401 = vadd.f32 %v1191, %v1296
      %v1402 = vadd.f32 %v1192, %v1297
      %v1403 = vadd.f32 %v1193, %v1298
      %v1404 = vadd.f32 %v1194, %v1299
      %v1405 = vadd.f32 %v1195, %v1300
      %v1406 = vadd.f32 %v1196, %v1301
      %v1407 = vadd.f32 %v1197, %v1302
      %v1408 = vadd.f32 %v1198, %v1303
      %v1409 = vadd.f32 %v1199, %v1304
      %v1410 = vadd.f32 %v1200, %v1305
      %v1411 = vadd.f32 %v1201, %v1306
      %v1412 = vadd.f32 %v1202, %v1307
      %v1413 = vadd.f32 %v1203, %v1308
      %v1414 = vadd.f32 %v1204, %v1309
      %v1415 = vadd.f32 %v1205, %v1310
      %v1416 = vadd.f32 %v1206, %v1311
      %v1417 = vadd.f32 %v1207, %v1312
      %v1418 = vadd.f32 %v1208, %v1313
      %v1419 = vadd.f32 %v1209, %v1314
      %v1420 = vadd.f32 %v1210, %v1315
      %v1421 = vadd.f32 %v1211, %v1316
      %v1422 = vadd.f32 %v1212, %v1317
      %v1423 = vadd.f32 %v1213, %v1318
      %v1424 = vadd.f32 %v1214, %v1319
      %v1425 = vadd.f32 %v1215, %v1320
      %v1426 = vadd.f32 %v1216, %v1321
      %v1427 = vadd.f32 %v1217, %v1322
      %v1428 = vadd.f32 %v1218, %v1323
      %v1429 = vadd.f32 %v1219, %v1324
      %v1430 = vadd.f32 %v1220, %v1325
      %v1431 = vadd.f32 %v1221, %v1326
      %v1432 = vadd.f32 %v1222, %v1327
      %v1433 = vadd.f32 %v1223, %v1328
      %v1434 = vadd.f32 %v1224, %v1329
      %v1435 = vadd.f32 %v1225, %v1330
      %v1436 = vadd.f32 %v1226, %v1331
      %v1437 = vadd.f32 %v1227, %v1332
      %v1438 = vadd.f32 %v1228, %v1333
      %v1439 = vadd.f32 %v1229, %v1334
      %v1440 = vadd.f32 %v1230, %v1335
      %v1441 = vadd.f32 %v1231, %v1336
      %v1442 = vadd.f32 %v1232, %v1337
      %v1443 = vadd.f32 %v1233, %v1338
      %v1444 = vadd.f32 %v1234, %v1339
      %v1445 = vadd.f32 %v1235, %v1340
      %v1446 = vadd.f32 %v1236, %v1341
      %v1447 = vadd.f32 %v1237, %v1342
      %v1448 = vadd.f32 %v1238, %v1343
      %v1449 = vadd.f32 %v1239, %v1344
      %v1450 = vadd.f32 %v1240, %v1345
      %v1451 = vadd.f32 %v1241, %v1346
      %v1452 = vadd.f32 %v1242, %v1347
      %v1453 = vadd.f32 %v1243, %v1348
      %v1454 = vadd.f32 %v1244, %v1349
      %v1455 = vadd.f32 %v1245, %v1350
      %v1456 = vadd.f32 %v1246, %v1351
      %v1457 = vadd.f32 %v1247, %v1352
      %v1458 = vadd.f32 %v1248, %v1353
      %v1459 = vadd.f32 %v1249, %v1354
      %v1460 = vadd.f32 %v1250, %v1355
      %v1461 = vadd.f32 %v1251, %v1356
      %v1462 = vadd.f32 %v1252, %v1357
      %v1463 = vadd.f32 %v1253, %v1358
      %v1464 = vadd.f32 %v1254, %v1359
      %v1465 = vadd.f32 %v1255, %v1360
      %v1466 = vadd.f32 %v1256, %v1361
      %1467 = vst [vmem:[%s202] sm:$0xff] %v1362
      %1468 = vst [vmem:[%s202 + $0x8] sm:$0xff] %v1363
      %1469 = vst [vmem:[%s202 + $0x10] sm:$0xff] %v1364
      %1470 = vst [vmem:[%s202 + $0x18] sm:$0xff] %v1365
      %1471 = vst [vmem:[%s202 + $0x20] sm:$0xff] %v1366
      %1472 = vst [vmem:[%s202 + $0x28] sm:$0xff] %v1367
      %1473 = vst.msk [vmem:[%s202 + $0x30] sm:$0xff] %vm314, %v1368
      %1474 = vst [vmem:[%s202 + $0x38] sm:$0xff] %v1369
      %1475 = vst [vmem:[%s202 + $0x40] sm:$0xff] %v1370
      %1476 = vst [vmem:[%s202 + $0x48] sm:$0xff] %v1371
      %1477 = vst [vmem:[%s202 + $0x50] sm:$0xff] %v1372
      %1478 = vst [vmem:[%s202 + $0x58] sm:$0xff] %v1373
      %1479 = vst [vmem:[%s202 + $0x60] sm:$0xff] %v1374
      %1480 = vst.msk [vmem:[%s202 + $0x68] sm:$0xff] %vm314, %v1375
      %1481 = vst [vmem:[%s202 + $0x70] sm:$0xff] %v1376
      %1482 = vst [vmem:[%s202 + $0x78] sm:$0xff] %v1377
      %1483 = vst [vmem:[%s202 + $0x80] sm:$0xff] %v1378
      %1484 = vst [vmem:[%s202 + $0x88] sm:$0xff] %v1379
      %1485 = vst [vmem:[%s202 + $0x90] sm:$0xff] %v1380
      %1486 = vst [vmem:[%s202 + $0x98] sm:$0xff] %v1381
      %1487 = vst.msk [vmem:[%s202 + $0xa0] sm:$0xff] %vm314, %v1382
      %1488 = vst [vmem:[%s202 + $0xa8] sm:$0xff] %v1383
      %1489 = vst [vmem:[%s202 + $0xb0] sm:$0xff] %v1384
      %1490 = vst [vmem:[%s202 + $0xb8] sm:$0xff] %v1385
      %1491 = vst [vmem:[%s202 + $0xc0] sm:$0xff] %v1386
      %1492 = vst [vmem:[%s202 + $0xc8] sm:$0xff] %v1387
      %1493 = vst [vmem:[%s202 + $0xd0] sm:$0xff] %v1388
      %1494 = vst.msk [vmem:[%s202 + $0xd8] sm:$0xff] %vm314, %v1389
      %1495 = vst [vmem:[%s202 + $0xe0] sm:$0xff] %v1390
      %1496 = vst [vmem:[%s202 + $0xe8] sm:$0xff] %v1391
      %1497 = vst [vmem:[%s202 + $0xf0] sm:$0xff] %v1392
      %1498 = vst [vmem:[%s202 + $0xf8] sm:$0xff] %v1393
      %1499 = vst [vmem:[%s202 + $0x100] sm:$0xff] %v1394
      %1500 = vst [vmem:[%s202 + $0x108] sm:$0xff] %v1395
      %1501 = vst.msk [vmem:[%s202 + $0x110] sm:$0xff] %vm314, %v1396
      %1502 = vst [vmem:[%s202 + $0x118] sm:$0xff] %v1397
      %1503 = vst [vmem:[%s202 + $0x120] sm:$0xff] %v1398
      %1504 = vst [vmem:[%s202 + $0x128] sm:$0xff] %v1399
      %1505 = vst [vmem:[%s202 + $0x130] sm:$0xff] %v1400
      %1506 = vst [vmem:[%s202 + $0x138] sm:$0xff] %v1401
      %1507 = vst [vmem:[%s202 + $0x140] sm:$0xff] %v1402
      %1508 = vst.msk [vmem:[%s202 + $0x148] sm:$0xff] %vm314, %v1403
      %1509 = vst [vmem:[%s202 + $0x150] sm:$0xff] %v1404
      %1510 = vst [vmem:[%s202 + $0x158] sm:$0xff] %v1405
      %1511 = vst [vmem:[%s202 + $0x160] sm:$0xff] %v1406
      %1512 = vst [vmem:[%s202 + $0x168] sm:$0xff] %v1407
      %1513 = vst [vmem:[%s202 + $0x170] sm:$0xff] %v1408
      %1514 = vst [vmem:[%s202 + $0x178] sm:$0xff] %v1409
      %1515 = vst.msk [vmem:[%s202 + $0x180] sm:$0xff] %vm314, %v1410
      %1516 = vst [vmem:[%s202 + $0x188] sm:$0xff] %v1411
      %1517 = vst [vmem:[%s202 + $0x190] sm:$0xff] %v1412
      %1518 = vst [vmem:[%s202 + $0x198] sm:$0xff] %v1413
      %1519 = vst [vmem:[%s202 + $0x1a0] sm:$0xff] %v1414
      %1520 = vst [vmem:[%s202 + $0x1a8] sm:$0xff] %v1415
      %1521 = vst [vmem:[%s202 + $0x1b0] sm:$0xff] %v1416
      %1522 = vst.msk [vmem:[%s202 + $0x1b8] sm:$0xff] %vm314, %v1417
      %1523 = vst [vmem:[%s202 + $0x1c0] sm:$0xff] %v1418
      %1524 = vst [vmem:[%s202 + $0x1c8] sm:$0xff] %v1419
      %1525 = vst [vmem:[%s202 + $0x1d0] sm:$0xff] %v1420
      %1526 = vst [vmem:[%s202 + $0x1d8] sm:$0xff] %v1421
      %1527 = vst [vmem:[%s202 + $0x1e0] sm:$0xff] %v1422
      %1528 = vst [vmem:[%s202 + $0x1e8] sm:$0xff] %v1423
      %1529 = vst.msk [vmem:[%s202 + $0x1f0] sm:$0xff] %vm314, %v1424
      %1530 = vst [vmem:[%s202 + $0x1f8] sm:$0xff] %v1425
      %1531 = vst [vmem:[%s202 + $0x200] sm:$0xff] %v1426
      %1532 = vst [vmem:[%s202 + $0x208] sm:$0xff] %v1427
      %1533 = vst [vmem:[%s202 + $0x210] sm:$0xff] %v1428
      %1534 = vst [vmem:[%s202 + $0x218] sm:$0xff] %v1429
      %1535 = vst [vmem:[%s202 + $0x220] sm:$0xff] %v1430
      %1536 = vst.msk [vmem:[%s202 + $0x228] sm:$0xff] %vm314, %v1431
      %1537 = vst [vmem:[%s202 + $0x230] sm:$0xff] %v1432
      %1538 = vst [vmem:[%s202 + $0x238] sm:$0xff] %v1433
      %1539 = vst [vmem:[%s202 + $0x240] sm:$0xff] %v1434
      %1540 = vst [vmem:[%s202 + $0x248] sm:$0xff] %v1435
      %1541 = vst [vmem:[%s202 + $0x250] sm:$0xff] %v1436
      %1542 = vst [vmem:[%s202 + $0x258] sm:$0xff] %v1437
      %1543 = vst.msk [vmem:[%s202 + $0x260] sm:$0xff] %vm314, %v1438
      %1544 = vst [vmem:[%s202 + $0x268] sm:$0xff] %v1439
      %1545 = vst [vmem:[%s202 + $0x270] sm:$0xff] %v1440
      %1546 = vst [vmem:[%s202 + $0x278] sm:$0xff] %v1441
      %1547 = vst [vmem:[%s202 + $0x280] sm:$0xff] %v1442
      %1548 = vst [vmem:[%s202 + $0x288] sm:$0xff] %v1443
      %1549 = vst [vmem:[%s202 + $0x290] sm:$0xff] %v1444
      %1550 = vst.msk [vmem:[%s202 + $0x298] sm:$0xff] %vm314, %v1445
      %1551 = vst [vmem:[%s202 + $0x2a0] sm:$0xff] %v1446
      %1552 = vst [vmem:[%s202 + $0x2a8] sm:$0xff] %v1447
      %1553 = vst [vmem:[%s202 + $0x2b0] sm:$0xff] %v1448
      %1554 = vst [vmem:[%s202 + $0x2b8] sm:$0xff] %v1449
      %1555 = vst [vmem:[%s202 + $0x2c0] sm:$0xff] %v1450
      %1556 = vst [vmem:[%s202 + $0x2c8] sm:$0xff] %v1451
      %1557 = vst.msk [vmem:[%s202 + $0x2d0] sm:$0xff] %vm314, %v1452
      %1558 = vst [vmem:[%s202 + $0x2d8] sm:$0xff] %v1453
      %1559 = vst [vmem:[%s202 + $0x2e0] sm:$0xff] %v1454
      %1560 = vst [vmem:[%s202 + $0x2e8] sm:$0xff] %v1455
      %1561 = vst [vmem:[%s202 + $0x2f0] sm:$0xff] %v1456
      %1562 = vst [vmem:[%s202 + $0x2f8] sm:$0xff] %v1457
      %1563 = vst [vmem:[%s202 + $0x300] sm:$0xff] %v1458
      %1564 = vst.msk [vmem:[%s202 + $0x308] sm:$0xff] %vm314, %v1459
      %1565 = vst [vmem:[%s202 + $0x310] sm:$0xff] %v1460
      %1566 = vst [vmem:[%s202 + $0x318] sm:$0xff] %v1461
      %1567 = vst [vmem:[%s202 + $0x320] sm:$0xff] %v1462
      %1568 = vst [vmem:[%s202 + $0x328] sm:$0xff] %v1463
      %1569 = vst [vmem:[%s202 + $0x330] sm:$0xff] %v1464
      %1570 = vst [vmem:[%s202 + $0x338] sm:$0xff] %v1465
      %1571 = vst.msk [vmem:[%s202 + $0x340] sm:$0xff] %vm314, %v1466
      %s1572 = smul.u32 15, %s14
      %p1573 = scmp.lt.s32.totalorder %s1572, 29
      %s1574 = scalar_select %p1573, %s1572, 29
      %s1575 = smul.addr %s1574, 7
      %s1576 = smul.addr %s1575, 8
      %s1577 = scalar_lea.vmem %s3, %s1576
      // Predicated region
      $region33: #{tpu_custom_call.1} parent=31 // pred_check
        %p1578 = pneg %p105
      $region34: #{tpu_custom_call.1} parent=31 // pred_check_branch
        %1580 = sbr.rel (%p1578) target = $region36
      $region35: #{tpu_custom_call.1} parent=31 // pred_region
        %s1581 = smul.u32 15, %s14
      $region36: #{tpu_custom_call.1} parent=31 // pred_fallthru
        _
    $region32: #{tpu_custom_call.1} parent=5 // pred_fallthru
      _
    %p1582 = scmp.le.s32.totalorder 2, %s9
    // Predicated region
    $region37: #{tpu_custom_call.1} parent=5 // pred_check
      %p1583 = pneg %p1582
    $region38: #{tpu_custom_call.1} parent=5 // pred_check_branch
      %1585 = sbr.rel (%p1583) target = $region40
    $region39: #{tpu_custom_call.1} parent=5 // pred_region
      %s1586 = ssub.s32 %s9, 2
      // Predicated region
      $region41: #{tpu_custom_call.1} parent=39 // pred_check
        %p1587 = pneg %p111
      $region42: #{tpu_custom_call.1} parent=39 // pred_check_branch
        %1589 = sbr.rel (%p1587) target = $region44
      $region43: #{tpu_custom_call.1} parent=39 // pred_region
        %s1590 = smul.u32 15, %s15
        %p1591 = scmp.lt.s32.totalorder %s1590, 29
        %s1592 = scalar_select %p1591, %s1590, 29
        %s1593 = smul.addr %s1592, 7
        %s1594 = smul.addr %s1593, 8
        %s1595 = scalar_lea.vmem %s3, %s1594
      $region44: #{tpu_custom_call.1} parent=39 // pred_fallthru
        _
    $region40: #{tpu_custom_call.1} parent=5 // pred_fallthru
      _
  $region6: #{tpu_custom_call.1} parent=0 // loop_footer
    %s13 = sadd.s32 1, %s9
  $region7: #{tpu_custom_call.1} parent=0 // loop_footer_branch
    %8 = sbr.rel target = $region3
  $region8: #{tpu_custom_call.1} parent=0 // loop_exit
    _

</llo_original>
